<compile_context>
chip_gen: v7x
topology: tpu7x:2x2x1
jax: 0.10.0
libtpu: 0.0.40
codegen_flags: <defaults>
</compile_context>

<pallas_src>
import functools

import numpy as np
import jax
import jax.numpy as jnp
from jax.experimental import pallas as pl
from jax.experimental.pallas import tpu as pltpu


def _round_up(x, m):
    return (x + m - 1) // m * m


def _msa_kernel(*refs, n_scales, n_basis, use_time_embedding):
    # Ref order: e, xs, [t], WqT, WkT, WvT, WoT, head_mask, head_mask^T, out
    if use_time_embedding:
        (e_ref, xs_ref, t_ref, wq_ref, wk_ref, wv_ref, wo_ref,
         hm_ref, hmt_ref, o_ref) = refs
    else:
        (e_ref, xs_ref, wq_ref, wk_ref, wv_ref, wo_ref,
         hm_ref, hmt_ref, o_ref) = refs
        t_ref = None

    C = n_basis
    f32 = jnp.float32

    wq = wq_ref[...]          # (C, C) bf16, already scaled by 1/sqrt(D)
    wk = wk_ref[...]          # (C, C) bf16
    wv = wv_ref[...]          # (C, C) bf16
    wo = wo_ref[...]          # (C, C) bf16
    hm = hm_ref[...]          # (C, H) f32 head block-sum matrix
    hmt = hmt_ref[...]        # (H, C) f32

    # Query projection (bf16 in, f32 accumulate).
    q = jnp.dot(e_ref[...], wq, preferred_element_type=f32)            # (TM, C)

    # Time-embedding contribution to K:  (xs + t) @ Wk == xs @ Wk + t @ Wk.
    if use_time_embedding:
        tk = jnp.dot(t_ref[...], wk, preferred_element_type=f32)       # (TM, C)

    # ---- pass 1: per-scale logits (only small (TM, H) tiles stay live) ----
    logits = []
    for s in range(n_scales):                                          # static, small
        xs_s = xs_ref[:, s * C:(s + 1) * C]                            # (TM, C) bf16 lane slice
        k_s = jnp.dot(xs_s, wk, preferred_element_type=f32)            # (TM, C) f32
        if use_time_embedding:
            k_s = k_s + tk
        # per-head dot product: sum over the D channels of each head
        logits.append(jnp.dot(q * k_s, hm, preferred_element_type=f32))  # (TM, H)

    # softmax over the scale axis (f32)
    m = logits[0]
    for s in range(1, n_scales):
        m = jnp.maximum(m, logits[s])
    ps = [jnp.exp(l - m) for l in logits]
    denom = ps[0]
    for s in range(1, n_scales):
        denom = denom + ps[s]
    inv = pl.reciprocal(denom, approx=True)                            # (TM, H), EUP slot

    # ---- pass 2: values + weighted sum (V recomputed here -> no value stash) ----
    y = jnp.zeros(q.shape, f32)
    for s in range(n_scales):
        xs_s = xs_ref[:, s * C:(s + 1) * C]                            # (TM, C) bf16
        v_s = jnp.dot(xs_s, wv, preferred_element_type=f32)            # (TM, C) f32
        att_c = jnp.dot(ps[s] * inv, hmt, preferred_element_type=f32)  # (TM, C): head -> channels
        y = y + v_s * att_c

    # output projection
    o_ref[...] = jnp.dot(y.astype(wo.dtype), wo,
                         preferred_element_type=f32).astype(o_ref.dtype)


def multi_scale_attention(xs, e, t, params, *, n_heads=8, use_time_embedding=True,
                          block_rows=512, vmem_limit_bytes=48 * 1024 * 1024,
                          compute_dtype=jnp.bfloat16):
    """xs: (N_b, N_a, S, C), e: (N_b, N_a, C), t: (N_b, 1, 1, C).  Returns (N_b, N_a, C)."""
    Nb, Na, S, C = xs.shape
    assert C % n_heads == 0, "Mismatch Head Numbers."
    assert C % 2 == 0, "Must Be Even number of Atom Features."
    D = C // n_heads
    H = n_heads
    M = Nb * Na
    out_dtype = e.dtype

    # ---- row-tile (TM) selection: big tiles, minimal padding, VMEM-budgeted ----
    num_blocks = max(1, -(-M // block_rows))              # cdiv
    TM = _round_up(-(-M // num_blocks), 8)                # spread rows evenly, mult of 8

    def vmem_est(tm):
        bf, f = 2, 4
        est = 2 * tm * S * C * bf                         # xs block (double buffered)
        est += 2 * 2 * tm * C * bf                        # e + t blocks
        est += 2 * tm * C * f                             # out block
        est += 2 * 4 * C * C * bf                         # weight matrices
        est += 2 * 2 * C * max(H, 128) * f                # head masks (lane padded)
        est += 8 * tm * C * f                             # f32 temporaries / spills
        est += 2 * S * tm * 128 * f                       # logits / ps lists (lane padded)
        return est

    budget = vmem_limit_bytes // 2
    while TM > 8 and vmem_est(TM) > budget:
        TM = max(8, (TM // 2) // 8 * 8)

    # v7x has 2 TensorCores: keep the "parallel" grid axis at >= 2 steps.
    if _round_up(M, TM) // TM < 2 and TM >= 16:
        TM = max(8, (TM // 2) // 8 * 8)

    M_pad = _round_up(M, TM)

    # ---- layout plumbing: free reshapes only (no HBM transpose of xs) ----
    xs_2d = xs.reshape(M, S * C).astype(compute_dtype)    # scale packed along lanes
    e_2d = e.reshape(M, C).astype(compute_dtype)
    if use_time_embedding:
        t_2d = jnp.broadcast_to(t.reshape(Nb, 1, C), (Nb, Na, C)).reshape(M, C)
        t_2d = t_2d.astype(compute_dtype)

    if M_pad != M:
        pad = M_pad - M
        xs_2d = jnp.pad(xs_2d, ((0, pad), (0, 0)))
        e_2d = jnp.pad(e_2d, ((0, pad), (0, 0)))
        if use_time_embedding:
            t_2d = jnp.pad(t_2d, ((0, pad), (0, 0)))

    # Dense weights pre-transposed to (in, out); 1/sqrt(D) folded into Wq.
    inv_scale = np.float32(1.0 / np.sqrt(D))
    wqT = (params["wq"].T * inv_scale).astype(compute_dtype)
    wkT = params["wk"].T.astype(compute_dtype)
    wvT = params["wv"].T.astype(compute_dtype)
    woT = params["wo"].T.astype(compute_dtype)

    # Head block-sum matrix (C, H) and its transpose (exact 0/1 values, f32).
    head_ids = np.arange(C) // D
    hm_np = (head_ids[:, None] == np.arange(H)[None, :]).astype(np.float32)
    hm = jnp.asarray(hm_np)
    hmt = jnp.asarray(hm_np.T)

    kernel = functools.partial(_msa_kernel, n_scales=S, n_basis=C,
                               use_time_embedding=use_time_embedding)

    full = lambda i: (0, 0)
    row_map = lambda i: (i, 0)
    in_specs = [pl.BlockSpec((TM, C), row_map),            # e rows
                pl.BlockSpec((TM, S * C), row_map)]        # xs rows (scales in lanes)
    args = [e_2d, xs_2d]
    if use_time_embedding:
        in_specs.append(pl.BlockSpec((TM, C), row_map))    # t rows
        args.append(t_2d)
    in_specs += [pl.BlockSpec((C, C), full)] * 4           # WqT, WkT, WvT, WoT (resident)
    in_specs += [pl.BlockSpec((C, H), full),               # head mask
                 pl.BlockSpec((H, C), full)]               # head mask^T
    args += [wqT, wkT, wvT, woT, hm, hmt]

    out = pl.pallas_call(
        kernel,
        out_shape=jax.ShapeDtypeStruct((M_pad, C), out_dtype),
        grid=(M_pad // TM,),
        in_specs=in_specs,
        out_specs=pl.BlockSpec((TM, C), row_map),
        compiler_params=pltpu.CompilerParams(
            dimension_semantics=("parallel",),
            vmem_limit_bytes=vmem_limit_bytes),
    )(*args)

    return out[:M].reshape(Nb, Na, C)


def _reference(xs, e, t, params, n_heads, use_time_embedding=True):
    """Pure-JAX transcription of the PyTorch forward (for verification)."""
    Nb, Na, S, C = xs.shape
    D = C // n_heads
    xt = xs + t if use_time_embedding else xs
    q = jnp.einsum('bac,oc->bao', e, params["wq"])
    k = jnp.einsum('basc,oc->baso', xt, params["wk"])
    v = jnp.einsum('basc,oc->baso', xs, params["wv"])
    qh = q.reshape(Nb, Na, n_heads, D)
    kh = k.reshape(Nb, Na, S, n_heads, D)
    vh = v.reshape(Nb, Na, S, n_heads, D)
    logits = jnp.einsum('bahd,bashd->bash', qh, kh) / np.float32(np.sqrt(D))
    att = jax.nn.softmax(logits, axis=2)                  # softmax over scales
    m_agg = jnp.einsum('bashd,bash->bahd', vh, att).reshape(Nb, Na, C)
    return jnp.einsum('bac,oc->bao', m_agg, params["wo"])


if __name__ == "__main__":
    Nb, Na, S, C, H = 2, 8, 4, 32, 8          # batch, atoms, n_scales, n_atom_basis, heads
    key = jax.random.PRNGKey(0)
    ks = jax.random.split(key, 7)

    xs = jax.random.normal(ks[0], (Nb, Na, S, C), jnp.float32)
    e = jax.random.normal(ks[1], (Nb, Na, C), jnp.float32)
    t = jax.random.normal(ks[2], (Nb, 1, 1, C), jnp.float32)   # time embedding

    w_scale = 1.0 / np.sqrt(C)                 # deterministic synthetic weights
    params = {
        "wq": jax.random.normal(ks[3], (C, C), jnp.float32) * w_scale,
        "wk": jax.random.normal(ks[4], (C, C), jnp.float32) * w_scale,
        "wv": jax.random.normal(ks[5], (C, C), jnp.float32) * w_scale,
        "wo": jax.random.normal(ks[6], (C, C), jnp.float32) * w_scale,
    }

    out = multi_scale_attention(xs, e, t, params, n_heads=H, use_time_embedding=True)
    out = jax.block_until_ready(out)
    assert out.shape == (Nb, Na, C)

    ref = jax.block_until_ready(_reference(xs, e, t, params, H, True))
    # bf16 MXU inputs + approx reciprocal: tolerance relaxed slightly vs the f32 path.
    np.testing.assert_allclose(np.asarray(out), np.asarray(ref), rtol=2e-2, atol=2e-2)

    print("KERNEL_OK")
</pallas_src>

<mosaic_0001>
module attributes {stable_mosaic.version = 11 : i64} {
  func.func @_msa_kernel(%arg0: i32, %arg1: memref<8x32xbf16, #tpu.memory_space<vmem>>, %arg2: memref<8x128xbf16, #tpu.memory_space<vmem>>, %arg3: memref<8x32xbf16, #tpu.memory_space<vmem>>, %arg4: memref<32x32xbf16, #tpu.memory_space<vmem>>, %arg5: memref<32x32xbf16, #tpu.memory_space<vmem>>, %arg6: memref<32x32xbf16, #tpu.memory_space<vmem>>, %arg7: memref<32x32xbf16, #tpu.memory_space<vmem>>, %arg8: memref<32x8xf32, #tpu.memory_space<vmem>>, %arg9: memref<8x32xf32, #tpu.memory_space<vmem>>, %arg10: memref<8x32xf32, #tpu.memory_space<vmem>>) attributes {dimension_semantics = [#tpu.dimension_semantics<parallel>], iteration_bounds = array<i64: 2>, scalar_prefetch = 0 : i64, scratch_operands = 0 : i64, tpu.core_type = #tpu.core_type<tc>, window_params = [{transform_indices = @transform_0, window_bounds = array<i64: 8, 32>}, {transform_indices = @transform_1, window_bounds = array<i64: 8, 128>}, {transform_indices = @transform_2, window_bounds = array<i64: 8, 32>}, {pipeline_mode = #tpu.pipeline_mode<synchronous>, transform_indices = @transform_3, window_bounds = array<i64: 32, 32>}, {pipeline_mode = #tpu.pipeline_mode<synchronous>, transform_indices = @transform_4, window_bounds = array<i64: 32, 32>}, {pipeline_mode = #tpu.pipeline_mode<synchronous>, transform_indices = @transform_5, window_bounds = array<i64: 32, 32>}, {pipeline_mode = #tpu.pipeline_mode<synchronous>, transform_indices = @transform_6, window_bounds = array<i64: 32, 32>}, {pipeline_mode = #tpu.pipeline_mode<synchronous>, transform_indices = @transform_7, window_bounds = array<i64: 32, 8>}, {pipeline_mode = #tpu.pipeline_mode<synchronous>, transform_indices = @transform_8, window_bounds = array<i64: 8, 32>}, {transform_indices = @transform_9, window_bounds = array<i64: 8, 32>}]} {
    %c0 = arith.constant 0 : index
    %c0_0 = arith.constant 0 : index
    %0 = vector.load %arg4[%c0, %c0_0] : memref<32x32xbf16, #tpu.memory_space<vmem>>, vector<32x32xbf16>
    %c0_1 = arith.constant 0 : index
    %c0_2 = arith.constant 0 : index
    %1 = vector.load %arg5[%c0_1, %c0_2] : memref<32x32xbf16, #tpu.memory_space<vmem>>, vector<32x32xbf16>
    %c0_3 = arith.constant 0 : index
    %c0_4 = arith.constant 0 : index
    %2 = vector.load %arg6[%c0_3, %c0_4] : memref<32x32xbf16, #tpu.memory_space<vmem>>, vector<32x32xbf16>
    %c0_5 = arith.constant 0 : index
    %c0_6 = arith.constant 0 : index
    %3 = vector.load %arg7[%c0_5, %c0_6] : memref<32x32xbf16, #tpu.memory_space<vmem>>, vector<32x32xbf16>
    %c0_7 = arith.constant 0 : index
    %c0_8 = arith.constant 0 : index
    %4 = vector.load %arg8[%c0_7, %c0_8] : memref<32x8xf32, #tpu.memory_space<vmem>>, vector<32x8xf32>
    %c0_9 = arith.constant 0 : index
    %c0_10 = arith.constant 0 : index
    %5 = vector.load %arg9[%c0_9, %c0_10] : memref<8x32xf32, #tpu.memory_space<vmem>>, vector<8x32xf32>
    %c0_11 = arith.constant 0 : index
    %c0_12 = arith.constant 0 : index
    %6 = vector.load %arg1[%c0_11, %c0_12] : memref<8x32xbf16, #tpu.memory_space<vmem>>, vector<8x32xbf16>
    %cst = arith.constant dense<0.000000e+00> : vector<8x32xf32>
    %7 = tpu.matmul %6, %0, %cst {dimension_numbers = #tpu.dot_dimension_numbers<[1], [0], [0], [1], [0, 0, 1, 1], [], []>} : vector<8x32xbf16>, vector<32x32xbf16>, vector<8x32xf32> -> vector<8x32xf32>
    %c0_13 = arith.constant 0 : index
    %c0_14 = arith.constant 0 : index
    %8 = vector.load %arg3[%c0_13, %c0_14] : memref<8x32xbf16, #tpu.memory_space<vmem>>, vector<8x32xbf16>
    %cst_15 = arith.constant dense<0.000000e+00> : vector<8x32xf32>
    %9 = tpu.matmul %8, %1, %cst_15 {dimension_numbers = #tpu.dot_dimension_numbers<[1], [0], [0], [1], [0, 0, 1, 1], [], []>} : vector<8x32xbf16>, vector<32x32xbf16>, vector<8x32xf32> -> vector<8x32xf32>
    %c0_16 = arith.constant 0 : index
    %c0_17 = arith.constant 0 : index
    %10 = vector.load %arg2[%c0_16, %c0_17] : memref<8x128xbf16, #tpu.memory_space<vmem>>, vector<8x32xbf16>
    %cst_18 = arith.constant dense<0.000000e+00> : vector<8x32xf32>
    %11 = tpu.matmul %10, %1, %cst_18 {dimension_numbers = #tpu.dot_dimension_numbers<[1], [0], [0], [1], [0, 0, 1, 1], [], []>} : vector<8x32xbf16>, vector<32x32xbf16>, vector<8x32xf32> -> vector<8x32xf32>
    %12 = arith.addf %11, %9 : vector<8x32xf32>
    %13 = arith.mulf %7, %12 : vector<8x32xf32>
    %cst_19 = arith.constant dense<0.000000e+00> : vector<8x8xf32>
    %14 = tpu.matmul %13, %4, %cst_19 {dimension_numbers = #tpu.dot_dimension_numbers<[1], [0], [0], [1], [0, 0, 1, 1], [], []>} : vector<8x32xf32>, vector<32x8xf32>, vector<8x8xf32> -> vector<8x8xf32>
    %c0_20 = arith.constant 0 : index
    %c32 = arith.constant 32 : index
    %15 = vector.load %arg2[%c0_20, %c32] : memref<8x128xbf16, #tpu.memory_space<vmem>>, vector<8x32xbf16>
    %cst_21 = arith.constant dense<0.000000e+00> : vector<8x32xf32>
    %16 = tpu.matmul %15, %1, %cst_21 {dimension_numbers = #tpu.dot_dimension_numbers<[1], [0], [0], [1], [0, 0, 1, 1], [], []>} : vector<8x32xbf16>, vector<32x32xbf16>, vector<8x32xf32> -> vector<8x32xf32>
    %17 = arith.addf %16, %9 : vector<8x32xf32>
    %18 = arith.mulf %7, %17 : vector<8x32xf32>
    %cst_22 = arith.constant dense<0.000000e+00> : vector<8x8xf32>
    %19 = tpu.matmul %18, %4, %cst_22 {dimension_numbers = #tpu.dot_dimension_numbers<[1], [0], [0], [1], [0, 0, 1, 1], [], []>} : vector<8x32xf32>, vector<32x8xf32>, vector<8x8xf32> -> vector<8x8xf32>
    %c0_23 = arith.constant 0 : index
    %c64 = arith.constant 64 : index
    %20 = vector.load %arg2[%c0_23, %c64] : memref<8x128xbf16, #tpu.memory_space<vmem>>, vector<8x32xbf16>
    %cst_24 = arith.constant dense<0.000000e+00> : vector<8x32xf32>
    %21 = tpu.matmul %20, %1, %cst_24 {dimension_numbers = #tpu.dot_dimension_numbers<[1], [0], [0], [1], [0, 0, 1, 1], [], []>} : vector<8x32xbf16>, vector<32x32xbf16>, vector<8x32xf32> -> vector<8x32xf32>
    %22 = arith.addf %21, %9 : vector<8x32xf32>
    %23 = arith.mulf %7, %22 : vector<8x32xf32>
    %cst_25 = arith.constant dense<0.000000e+00> : vector<8x8xf32>
    %24 = tpu.matmul %23, %4, %cst_25 {dimension_numbers = #tpu.dot_dimension_numbers<[1], [0], [0], [1], [0, 0, 1, 1], [], []>} : vector<8x32xf32>, vector<32x8xf32>, vector<8x8xf32> -> vector<8x8xf32>
    %c0_26 = arith.constant 0 : index
    %c96 = arith.constant 96 : index
    %25 = vector.load %arg2[%c0_26, %c96] : memref<8x128xbf16, #tpu.memory_space<vmem>>, vector<8x32xbf16>
    %cst_27 = arith.constant dense<0.000000e+00> : vector<8x32xf32>
    %26 = tpu.matmul %25, %1, %cst_27 {dimension_numbers = #tpu.dot_dimension_numbers<[1], [0], [0], [1], [0, 0, 1, 1], [], []>} : vector<8x32xbf16>, vector<32x32xbf16>, vector<8x32xf32> -> vector<8x32xf32>
    %27 = arith.addf %26, %9 : vector<8x32xf32>
    %28 = arith.mulf %7, %27 : vector<8x32xf32>
    %cst_28 = arith.constant dense<0.000000e+00> : vector<8x8xf32>
    %29 = tpu.matmul %28, %4, %cst_28 {dimension_numbers = #tpu.dot_dimension_numbers<[1], [0], [0], [1], [0, 0, 1, 1], [], []>} : vector<8x32xf32>, vector<32x8xf32>, vector<8x8xf32> -> vector<8x8xf32>
    %30 = arith.maximumf %14, %19 : vector<8x8xf32>
    %31 = arith.maximumf %30, %24 : vector<8x8xf32>
    %32 = arith.maximumf %31, %29 : vector<8x8xf32>
    %33 = arith.subf %14, %32 : vector<8x8xf32>
    %34 = math.exp %33 : vector<8x8xf32>
    %35 = arith.subf %19, %32 : vector<8x8xf32>
    %36 = math.exp %35 : vector<8x8xf32>
    %37 = arith.subf %24, %32 : vector<8x8xf32>
    %38 = math.exp %37 : vector<8x8xf32>
    %39 = arith.subf %29, %32 : vector<8x8xf32>
    %40 = math.exp %39 : vector<8x8xf32>
    %41 = arith.addf %34, %36 : vector<8x8xf32>
    %42 = arith.addf %41, %38 : vector<8x8xf32>
    %43 = arith.addf %42, %40 : vector<8x8xf32>
    %44 = tpu.reciprocal %43 {approx = true} : vector<8x8xf32> -> vector<8x8xf32>
    %cst_29 = arith.constant 0.000000e+00 : f32
    %45 = vector.broadcast %cst_29 : f32 to vector<8x32xf32>
    %c0_30 = arith.constant 0 : index
    %c0_31 = arith.constant 0 : index
    %46 = vector.load %arg2[%c0_30, %c0_31] : memref<8x128xbf16, #tpu.memory_space<vmem>>, vector<8x32xbf16>
    %cst_32 = arith.constant dense<0.000000e+00> : vector<8x32xf32>
    %47 = tpu.matmul %46, %2, %cst_32 {dimension_numbers = #tpu.dot_dimension_numbers<[1], [0], [0], [1], [0, 0, 1, 1], [], []>} : vector<8x32xbf16>, vector<32x32xbf16>, vector<8x32xf32> -> vector<8x32xf32>
    %48 = arith.mulf %34, %44 : vector<8x8xf32>
    %cst_33 = arith.constant dense<0.000000e+00> : vector<8x32xf32>
    %49 = tpu.matmul %48, %5, %cst_33 {dimension_numbers = #tpu.dot_dimension_numbers<[1], [0], [0], [1], [0, 0, 1, 1], [], []>} : vector<8x8xf32>, vector<8x32xf32>, vector<8x32xf32> -> vector<8x32xf32>
    %50 = arith.mulf %47, %49 : vector<8x32xf32>
    %51 = arith.addf %45, %50 : vector<8x32xf32>
    %c0_34 = arith.constant 0 : index
    %c32_35 = arith.constant 32 : index
    %52 = vector.load %arg2[%c0_34, %c32_35] : memref<8x128xbf16, #tpu.memory_space<vmem>>, vector<8x32xbf16>
    %cst_36 = arith.constant dense<0.000000e+00> : vector<8x32xf32>
    %53 = tpu.matmul %52, %2, %cst_36 {dimension_numbers = #tpu.dot_dimension_numbers<[1], [0], [0], [1], [0, 0, 1, 1], [], []>} : vector<8x32xbf16>, vector<32x32xbf16>, vector<8x32xf32> -> vector<8x32xf32>
    %54 = arith.mulf %36, %44 : vector<8x8xf32>
    %cst_37 = arith.constant dense<0.000000e+00> : vector<8x32xf32>
    %55 = tpu.matmul %54, %5, %cst_37 {dimension_numbers = #tpu.dot_dimension_numbers<[1], [0], [0], [1], [0, 0, 1, 1], [], []>} : vector<8x8xf32>, vector<8x32xf32>, vector<8x32xf32> -> vector<8x32xf32>
    %56 = arith.mulf %53, %55 : vector<8x32xf32>
    %57 = arith.addf %51, %56 : vector<8x32xf32>
    %c0_38 = arith.constant 0 : index
    %c64_39 = arith.constant 64 : index
    %58 = vector.load %arg2[%c0_38, %c64_39] : memref<8x128xbf16, #tpu.memory_space<vmem>>, vector<8x32xbf16>
    %cst_40 = arith.constant dense<0.000000e+00> : vector<8x32xf32>
    %59 = tpu.matmul %58, %2, %cst_40 {dimension_numbers = #tpu.dot_dimension_numbers<[1], [0], [0], [1], [0, 0, 1, 1], [], []>} : vector<8x32xbf16>, vector<32x32xbf16>, vector<8x32xf32> -> vector<8x32xf32>
    %60 = arith.mulf %38, %44 : vector<8x8xf32>
    %cst_41 = arith.constant dense<0.000000e+00> : vector<8x32xf32>
    %61 = tpu.matmul %60, %5, %cst_41 {dimension_numbers = #tpu.dot_dimension_numbers<[1], [0], [0], [1], [0, 0, 1, 1], [], []>} : vector<8x8xf32>, vector<8x32xf32>, vector<8x32xf32> -> vector<8x32xf32>
    %62 = arith.mulf %59, %61 : vector<8x32xf32>
    %63 = arith.addf %57, %62 : vector<8x32xf32>
    %c0_42 = arith.constant 0 : index
    %c96_43 = arith.constant 96 : index
    %64 = vector.load %arg2[%c0_42, %c96_43] : memref<8x128xbf16, #tpu.memory_space<vmem>>, vector<8x32xbf16>
    %cst_44 = arith.constant dense<0.000000e+00> : vector<8x32xf32>
    %65 = tpu.matmul %64, %2, %cst_44 {dimension_numbers = #tpu.dot_dimension_numbers<[1], [0], [0], [1], [0, 0, 1, 1], [], []>} : vector<8x32xbf16>, vector<32x32xbf16>, vector<8x32xf32> -> vector<8x32xf32>
    %66 = arith.mulf %40, %44 : vector<8x8xf32>
    %cst_45 = arith.constant dense<0.000000e+00> : vector<8x32xf32>
    %67 = tpu.matmul %66, %5, %cst_45 {dimension_numbers = #tpu.dot_dimension_numbers<[1], [0], [0], [1], [0, 0, 1, 1], [], []>} : vector<8x8xf32>, vector<8x32xf32>, vector<8x32xf32> -> vector<8x32xf32>
    %68 = arith.mulf %65, %67 : vector<8x32xf32>
    %69 = arith.addf %63, %68 : vector<8x32xf32>
    %70 = arith.truncf %69 : vector<8x32xf32> to vector<8x32xbf16>
    %cst_46 = arith.constant dense<0.000000e+00> : vector<8x32xf32>
    %71 = tpu.matmul %70, %3, %cst_46 {dimension_numbers = #tpu.dot_dimension_numbers<[1], [0], [0], [1], [0, 0, 1, 1], [], []>} : vector<8x32xbf16>, vector<32x32xbf16>, vector<8x32xf32> -> vector<8x32xf32>
    %c0_47 = arith.constant 0 : index
    %c0_48 = arith.constant 0 : index
    %72 = vector.load %arg10[%c0_47, %c0_48] : memref<8x32xf32, #tpu.memory_space<vmem>>, vector<8x32xf32>
    tpu.vector_store %arg10[%c0_47, %c0_48], %71 {strides = array<i32>} : memref<8x32xf32, #tpu.memory_space<vmem>>, vector<8x32xf32>,
    return
  }
  func.func @transform_0(%arg0: i32) -> (i32, i32) {
    %c0_i32 = arith.constant 0 : i32
    %c0_i32_0 = arith.constant 0 : i32
    return %arg0, %c0_i32 : i32, i32
  }
  func.func @transform_1(%arg0: i32) -> (i32, i32) {
    %c0_i32 = arith.constant 0 : i32
    %c0_i32_0 = arith.constant 0 : i32
    return %arg0, %c0_i32 : i32, i32
  }
  func.func @transform_2(%arg0: i32) -> (i32, i32) {
    %c0_i32 = arith.constant 0 : i32
    %c0_i32_0 = arith.constant 0 : i32
    return %arg0, %c0_i32 : i32, i32
  }
  func.func @transform_3(%arg0: i32) -> (i32, i32) {
    %c0_i32 = arith.constant 0 : i32
    %c0_i32_0 = arith.constant 0 : i32
    %c0_i32_1 = arith.constant 0 : i32
    return %c0_i32, %c0_i32_0 : i32, i32
  }
  func.func @transform_4(%arg0: i32) -> (i32, i32) {
    %c0_i32 = arith.constant 0 : i32
    %c0_i32_0 = arith.constant 0 : i32
    %c0_i32_1 = arith.constant 0 : i32
    return %c0_i32, %c0_i32_0 : i32, i32
  }
  func.func @transform_5(%arg0: i32) -> (i32, i32) {
    %c0_i32 = arith.constant 0 : i32
    %c0_i32_0 = arith.constant 0 : i32
    %c0_i32_1 = arith.constant 0 : i32
    return %c0_i32, %c0_i32_0 : i32, i32
  }
  func.func @transform_6(%arg0: i32) -> (i32, i32) {
    %c0_i32 = arith.constant 0 : i32
    %c0_i32_0 = arith.constant 0 : i32
    %c0_i32_1 = arith.constant 0 : i32
    return %c0_i32, %c0_i32_0 : i32, i32
  }
  func.func @transform_7(%arg0: i32) -> (i32, i32) {
    %c0_i32 = arith.constant 0 : i32
    %c0_i32_0 = arith.constant 0 : i32
    %c0_i32_1 = arith.constant 0 : i32
    return %c0_i32, %c0_i32_0 : i32, i32
  }
  func.func @transform_8(%arg0: i32) -> (i32, i32) {
    %c0_i32 = arith.constant 0 : i32
    %c0_i32_0 = arith.constant 0 : i32
    %c0_i32_1 = arith.constant 0 : i32
    return %c0_i32, %c0_i32_0 : i32, i32
  }
  func.func @transform_9(%arg0: i32) -> (i32, i32) {
    %c0_i32 = arith.constant 0 : i32
    %c0_i32_0 = arith.constant 0 : i32
    return %arg0, %c0_i32 : i32, i32
  }
}

</mosaic_0001>

<llo_original>
// kernel: tpu_custom_call.1
$region0: #{tpu_custom_call.1}
  #allocation0 [shape = 'u32[]', space=smem, size = 0x4, offset = 0x4, fixed_abs, tag = 'smem constant byte address 0x4 - core index']
  #allocation1 [shape = 'u32[144,128]{1,0:T(1,128)}', space=vmem, size = 0x12000, scoped, tag = 'internal scratch']
  %s0 = inlined_call_operand.hbm [shape: bf16[16,32], index: 0, kind: input, shape index: {}]
  %s1 = inlined_call_operand.hbm [shape: bf16[16,128], index: 1, kind: input, shape index: {}]
  %s2 = inlined_call_operand.hbm [shape: bf16[16,32], index: 2, kind: input, shape index: {}]
  %s3 = inlined_call_operand.vmem [shape: bf16[32,32], index: 3, kind: input, shape index: {}]
  %s4 = inlined_call_operand.vmem [shape: bf16[32,32], index: 4, kind: input, shape index: {}]
  %s5 = inlined_call_operand.vmem [shape: bf16[32,32], index: 5, kind: input, shape index: {}]
  %s6 = inlined_call_operand.hbm [shape: bf16[32,32], index: 6, kind: input, shape index: {}]
  %s7 = inlined_call_operand.vmem [shape: f32[32,8], index: 7, kind: input, shape index: {}]
  %s8 = inlined_call_operand.vmem [shape: f32[8,32], index: 8, kind: input, shape index: {}]
  %s9 = inlined_call_operand.hbm [shape: f32[16,32], index: 9, kind: output, shape index: {}]
  %s10 = sld [smem:[#allocation0]]
  $region85: #{tpu_custom_call.1} parent=0
    _
  %s12 = ssub.s32 1, %s10
  %s13 = scalar_select 0, %s12, %s10
  $region1: #{tpu_custom_call.1} parent=0
    #allocation2 [shape = 'u8[4096]{0}', space=vmem, size = 0x1000, scoped, tag = 'input window, operand 0']
    #allocation3 [shape = 's32[2]{0}', space=sflag, size = 0x8, scoped, tag = 'scoped memory for tpu_custom_call.1']
    #allocation4 [shape = 's32[2]{0}', space=sflag, size = 0x8, scoped, tag = 'scoped memory for tpu_custom_call.1']
    #allocation5 [shape = 'u8[4096]{0}', space=vmem, size = 0x1000, scoped, tag = 'input window, operand 1']
    #allocation6 [shape = 's32[2]{0}', space=sflag, size = 0x8, scoped, tag = 'scoped memory for tpu_custom_call.1']
    #allocation7 [shape = 'u8[4096]{0}', space=vmem, size = 0x1000, scoped, tag = 'input window, operand 2']
    #allocation8 [shape = 'u8[8192]{0}', space=vmem, size = 0x2000, scoped, tag = 'input window, operand 6, single buffered']
    #allocation9 [shape = 's32[1]{0}', space=sflag, size = 0x4, scoped, tag = 'scoped memory for tpu_custom_call.1']
    #allocation10 [shape = 'u8[8192]{0}', space=vmem, size = 0x2000, scoped, tag = 'output window, operand 0']
    %14 = vsyncpa [#allocation3], 0
    %s15 = scalar_lea.sflag [#allocation3], 1
    %16 = vsyncpa %s15, 0
    %17 = vsyncpa [#allocation6], 0
    %s18 = scalar_lea.sflag [#allocation6], 1
    %19 = vsyncpa %s18, 0
    %20 = vsyncpa [#allocation9], 0
    %21 = vsyncpa [#allocation4], 0
    %s22 = scalar_lea.sflag [#allocation4], 1
    %23 = vsyncpa %s22, 0
    loop: start=0, step=1, limit=4
    $region2: #{tpu_custom_call.1} parent=1 // loop_pre_header
      _
    $region3: #{tpu_custom_call.1} parent=1 // loop_header
      %s25 = sphi 0, %s29
      %p26 = scmp.ge.s32.totalorder %s25, 4
      %s35 = sphi 0, %s37
      %s38 = sphi 0, %s35
      %s39 = sphi 0, %s38
      %s55 = sphi 0, %s39
      %s61 = sphi 0, %s63
      %s64 = sphi 0, %s61
      %s65 = sphi 0, %s64
      %s81 = sphi 0, %s65
      %s87 = sphi 0, %s89
      %s90 = sphi 0, %s87
      %s91 = sphi 0, %s90
      %s107 = sphi 0, %s91
      %s111 = sphi 0, %s111
      %s113 = sphi 0, %s111
      %s114 = sphi 0, %s113
      %s128 = sphi 0, %s114
      %s132 = sphi 0, %s132
      %s134 = sphi 0, %s132
      %s135 = sphi 0, %s134
      %s149 = sphi 0, %s135
      %s153 = sphi 0, %s153
      %s155 = sphi 0, %s153
      %s156 = sphi 0, %s155
      %s170 = sphi 0, %s156
      %s174 = sphi 0, %s174
      %s176 = sphi 0, %s174
      %s177 = sphi 0, %s176
      %s191 = sphi 0, %s177
      %s195 = sphi 0, %s195
      %s197 = sphi 0, %s195
      %s198 = sphi 0, %s197
      %s212 = sphi 0, %s198
      %s216 = sphi 0, %s216
      %s218 = sphi 0, %s216
      %s219 = sphi 0, %s218
      %s233 = sphi 0, %s219
      %s239 = sphi 0, %s241
      %s242 = sphi 0, %s239
      %s243 = sphi 0, %s242
      %s259 = sphi 0, %s243
    $region4: #{tpu_custom_call.1} parent=1 // loop_header_branch
      %28 = sbr.rel (%p26) target = $region8
    $region5: #{tpu_custom_call.1} parent=1 // loop_body
      %s30 = ssub.s32 %s25, 1
      %s31 = ssub.s32 %s25, 2
      %s32 = sadd.s32 %s25, 1
      %s33 = ssub.s32 %s25, %s32
      %p34 = scmp.eq.s32.totalorder %s33, 0
      %s36 = sadd.s32 %s35, 1
      %s37 = scalar_select %p34, %s35, %s36
      %p40 = pneg %p34
      %p41 = scmp.eq.s32.totalorder %s25, 1
      %p42 = por %p40, %p41
      %p43 = scmp.ne.s32.totalorder %s35, %s38
      %p44 = scmp.eq.s32.totalorder %s25, 0
      %p45 = por %p43, %p44
      %p46 = scmp.ne.s32.totalorder %s35, %s38
      %p47 = scmp.eq.s32.totalorder %s30, 1
      %p48 = por %p46, %p47
      %p49 = scmp.ne.s32.totalorder %s38, %s39
      %p50 = scmp.eq.s32.totalorder %s30, 0
      %p51 = por %p49, %p50
      %p52 = scmp.ne.s32.totalorder %s38, %s39
      %p53 = scmp.eq.s32.totalorder %s31, 1
      %p54 = por %p52, %p53
      %p56 = scmp.ne.s32.totalorder %s39, %s55
      %p57 = scmp.eq.s32.totalorder %s31, 0
      %p58 = por %p56, %p57
      %s59 = ssub.s32 %s25, %s32
      %p60 = scmp.eq.s32.totalorder %s59, 0
      %s62 = sadd.s32 %s61, 1
      %s63 = scalar_select %p60, %s61, %s62
      %p66 = pneg %p60
      %p67 = scmp.eq.s32.totalorder %s25, 1
      %p68 = por %p66, %p67
      %p69 = scmp.ne.s32.totalorder %s61, %s64
      %p70 = scmp.eq.s32.totalorder %s25, 0
      %p71 = por %p69, %p70
      %p72 = scmp.ne.s32.totalorder %s61, %s64
      %p73 = scmp.eq.s32.totalorder %s30, 1
      %p74 = por %p72, %p73
      %p75 = scmp.ne.s32.totalorder %s64, %s65
      %p76 = scmp.eq.s32.totalorder %s30, 0
      %p77 = por %p75, %p76
      %p78 = scmp.ne.s32.totalorder %s64, %s65
      %p79 = scmp.eq.s32.totalorder %s31, 1
      %p80 = por %p78, %p79
      %p82 = scmp.ne.s32.totalorder %s65, %s81
      %p83 = scmp.eq.s32.totalorder %s31, 0
      %p84 = por %p82, %p83
      %s85 = ssub.s32 %s25, %s32
      %p86 = scmp.eq.s32.totalorder %s85, 0
      %s88 = sadd.s32 %s87, 1
      %s89 = scalar_select %p86, %s87, %s88
      %p92 = pneg %p86
      %p93 = scmp.eq.s32.totalorder %s25, 1
      %p94 = por %p92, %p93
      %p95 = scmp.ne.s32.totalorder %s87, %s90
      %p96 = scmp.eq.s32.totalorder %s25, 0
      %p97 = por %p95, %p96
      %p98 = scmp.ne.s32.totalorder %s87, %s90
      %p99 = scmp.eq.s32.totalorder %s30, 1
      %p100 = por %p98, %p99
      %p101 = scmp.ne.s32.totalorder %s90, %s91
      %p102 = scmp.eq.s32.totalorder %s30, 0
      %p103 = por %p101, %p102
      %p104 = scmp.ne.s32.totalorder %s90, %s91
      %p105 = scmp.eq.s32.totalorder %s31, 1
      %p106 = por %p104, %p105
      %p108 = scmp.ne.s32.totalorder %s91, %s107
      %p109 = scmp.eq.s32.totalorder %s31, 0
      %p110 = por %p108, %p109
      %s112 = sadd.s32 %s111, 1
      %p115 = scmp.eq.s32.totalorder %s25, 1
      %p116 = scmp.ne.s32.totalorder %s111, %s113
      %p117 = scmp.eq.s32.totalorder %s25, 0
      %p118 = por %p116, %p117
      %p119 = scmp.ne.s32.totalorder %s111, %s113
      %p120 = scmp.eq.s32.totalorder %s30, 1
      %p121 = por %p119, %p120
      %p122 = scmp.ne.s32.totalorder %s113, %s114
      %p123 = scmp.eq.s32.totalorder %s30, 0
      %p124 = por %p122, %p123
      %p125 = scmp.ne.s32.totalorder %s113, %s114
      %p126 = scmp.eq.s32.totalorder %s31, 1
      %p127 = por %p125, %p126
      %p129 = scmp.ne.s32.totalorder %s114, %s128
      %p130 = scmp.eq.s32.totalorder %s31, 0
      %p131 = por %p129, %p130
      %s133 = sadd.s32 %s132, 1
      %p136 = scmp.eq.s32.totalorder %s25, 1
      %p137 = scmp.ne.s32.totalorder %s132, %s134
      %p138 = scmp.eq.s32.totalorder %s25, 0
      %p139 = por %p137, %p138
      %p140 = scmp.ne.s32.totalorder %s132, %s134
      %p141 = scmp.eq.s32.totalorder %s30, 1
      %p142 = por %p140, %p141
      %p143 = scmp.ne.s32.totalorder %s134, %s135
      %p144 = scmp.eq.s32.totalorder %s30, 0
      %p145 = por %p143, %p144
      %p146 = scmp.ne.s32.totalorder %s134, %s135
      %p147 = scmp.eq.s32.totalorder %s31, 1
      %p148 = por %p146, %p147
      %p150 = scmp.ne.s32.totalorder %s135, %s149
      %p151 = scmp.eq.s32.totalorder %s31, 0
      %p152 = por %p150, %p151
      %s154 = sadd.s32 %s153, 1
      %p157 = scmp.eq.s32.totalorder %s25, 1
      %p158 = scmp.ne.s32.totalorder %s153, %s155
      %p159 = scmp.eq.s32.totalorder %s25, 0
      %p160 = por %p158, %p159
      %p161 = scmp.ne.s32.totalorder %s153, %s155
      %p162 = scmp.eq.s32.totalorder %s30, 1
      %p163 = por %p161, %p162
      %p164 = scmp.ne.s32.totalorder %s155, %s156
      %p165 = scmp.eq.s32.totalorder %s30, 0
      %p166 = por %p164, %p165
      %p167 = scmp.ne.s32.totalorder %s155, %s156
      %p168 = scmp.eq.s32.totalorder %s31, 1
      %p169 = por %p167, %p168
      %p171 = scmp.ne.s32.totalorder %s156, %s170
      %p172 = scmp.eq.s32.totalorder %s31, 0
      %p173 = por %p171, %p172
      %s175 = sadd.s32 %s174, 1
      %p178 = scmp.eq.s32.totalorder %s25, 1
      %p179 = scmp.ne.s32.totalorder %s174, %s176
      %p180 = scmp.eq.s32.totalorder %s25, 0
      %p181 = por %p179, %p180
      %p182 = scmp.ne.s32.totalorder %s174, %s176
      %p183 = scmp.eq.s32.totalorder %s30, 1
      %p184 = por %p182, %p183
      %p185 = scmp.ne.s32.totalorder %s176, %s177
      %p186 = scmp.eq.s32.totalorder %s30, 0
      %p187 = por %p185, %p186
      %p188 = scmp.ne.s32.totalorder %s176, %s177
      %p189 = scmp.eq.s32.totalorder %s31, 1
      %p190 = por %p188, %p189
      %p192 = scmp.ne.s32.totalorder %s177, %s191
      %p193 = scmp.eq.s32.totalorder %s31, 0
      %p194 = por %p192, %p193
      %s196 = sadd.s32 %s195, 1
      %p199 = scmp.eq.s32.totalorder %s25, 1
      %p200 = scmp.ne.s32.totalorder %s195, %s197
      %p201 = scmp.eq.s32.totalorder %s25, 0
      %p202 = por %p200, %p201
      %p203 = scmp.ne.s32.totalorder %s195, %s197
      %p204 = scmp.eq.s32.totalorder %s30, 1
      %p205 = por %p203, %p204
      %p206 = scmp.ne.s32.totalorder %s197, %s198
      %p207 = scmp.eq.s32.totalorder %s30, 0
      %p208 = por %p206, %p207
      %p209 = scmp.ne.s32.totalorder %s197, %s198
      %p210 = scmp.eq.s32.totalorder %s31, 1
      %p211 = por %p209, %p210
      %p213 = scmp.ne.s32.totalorder %s198, %s212
      %p214 = scmp.eq.s32.totalorder %s31, 0
      %p215 = por %p213, %p214
      %s217 = sadd.s32 %s216, 1
      %p220 = scmp.eq.s32.totalorder %s25, 1
      %p221 = scmp.ne.s32.totalorder %s216, %s218
      %p222 = scmp.eq.s32.totalorder %s25, 0
      %p223 = por %p221, %p222
      %p224 = scmp.ne.s32.totalorder %s216, %s218
      %p225 = scmp.eq.s32.totalorder %s30, 1
      %p226 = por %p224, %p225
      %p227 = scmp.ne.s32.totalorder %s218, %s219
      %p228 = scmp.eq.s32.totalorder %s30, 0
      %p229 = por %p227, %p228
      %p230 = scmp.ne.s32.totalorder %s218, %s219
      %p231 = scmp.eq.s32.totalorder %s31, 1
      %p232 = por %p230, %p231
      %p234 = scmp.ne.s32.totalorder %s219, %s233
      %p235 = scmp.eq.s32.totalorder %s31, 0
      %p236 = por %p234, %p235
      %s237 = ssub.s32 %s25, %s32
      %p238 = scmp.eq.s32.totalorder %s237, 0
      %s240 = sadd.s32 %s239, 1
      %s241 = scalar_select %p238, %s239, %s240
      %p244 = pneg %p238
      %p245 = scmp.eq.s32.totalorder %s25, 1
      %p246 = por %p244, %p245
      %p247 = scmp.ne.s32.totalorder %s239, %s242
      %p248 = scmp.eq.s32.totalorder %s25, 0
      %p249 = por %p247, %p248
      %p250 = scmp.ne.s32.totalorder %s239, %s242
      %p251 = scmp.eq.s32.totalorder %s30, 1
      %p252 = por %p250, %p251
      %p253 = scmp.ne.s32.totalorder %s242, %s243
      %p254 = scmp.eq.s32.totalorder %s30, 0
      %p255 = por %p253, %p254
      %p256 = scmp.ne.s32.totalorder %s242, %s243
      %p257 = scmp.eq.s32.totalorder %s31, 1
      %p258 = por %p256, %p257
      %p260 = scmp.ne.s32.totalorder %s243, %s259
      %p261 = scmp.eq.s32.totalorder %s31, 0
      %p262 = por %p260, %p261
      %p263 = scmp.le.s32.totalorder 1, %s25
      %p264 = scmp.lt.s32.totalorder %s25, 3
      %p265 = pnand %p263, %p264
      %p266 = pneg %p265
      // Predicated region
      $region9: #{tpu_custom_call.1} parent=5 // pred_check
        _
      $region10: #{tpu_custom_call.1} parent=5 // pred_check_branch
        %268 = sbr.rel (%p265) target = $region12
      $region11: #{tpu_custom_call.1} parent=5 // pred_region
        %s269 = ssub.s32 %s25, 1
        // Predicated region
        $region13: #{tpu_custom_call.1} parent=11 // pred_check
          %p270 = pneg %p124
        $region14: #{tpu_custom_call.1} parent=11 // pred_check_branch
          %272 = sbr.rel (%p270) target = $region16
        $region15: #{tpu_custom_call.1} parent=11 // pred_region
          _
        $region16: #{tpu_custom_call.1} parent=11 // pred_fallthru
          _
        // Predicated region
        $region17: #{tpu_custom_call.1} parent=11 // pred_check
          %p273 = pneg %p145
        $region18: #{tpu_custom_call.1} parent=11 // pred_check_branch
          %275 = sbr.rel (%p273) target = $region20
        $region19: #{tpu_custom_call.1} parent=11 // pred_region
          _
        $region20: #{tpu_custom_call.1} parent=11 // pred_fallthru
          _
        // Predicated region
        $region21: #{tpu_custom_call.1} parent=11 // pred_check
          %p276 = pneg %p166
        $region22: #{tpu_custom_call.1} parent=11 // pred_check_branch
          %278 = sbr.rel (%p276) target = $region24
        $region23: #{tpu_custom_call.1} parent=11 // pred_region
          _
        $region24: #{tpu_custom_call.1} parent=11 // pred_fallthru
          _
        // Predicated region
        $region25: #{tpu_custom_call.1} parent=11 // pred_check
          %p279 = pneg %p187
        $region26: #{tpu_custom_call.1} parent=11 // pred_check_branch
          %281 = sbr.rel (%p279) target = $region28
        $region27: #{tpu_custom_call.1} parent=11 // pred_region
          %s283 = ssub.s32 256, 256
          %284 = vsyncadd [#allocation9], %s283
          %s285 = sshll.u32 [#allocation8], 4
          %s286 = int_to_ptr.vmem [resolvable:$true] %s285
          %291 = dma.hbm_to_vmem [thread:$0]  %s6, 256, %s286, [#allocation9], 64, 64, 4
        $region28: #{tpu_custom_call.1} parent=11 // pred_fallthru
          _
        // Predicated region
        $region29: #{tpu_custom_call.1} parent=11 // pred_check
          %p292 = pneg %p208
        $region30: #{tpu_custom_call.1} parent=11 // pred_check_branch
          %294 = sbr.rel (%p292) target = $region32
        $region31: #{tpu_custom_call.1} parent=11 // pred_region
          _
        $region32: #{tpu_custom_call.1} parent=11 // pred_fallthru
          _
        // Predicated region
        $region33: #{tpu_custom_call.1} parent=11 // pred_check
          %p295 = pneg %p229
        $region34: #{tpu_custom_call.1} parent=11 // pred_check_branch
          %297 = sbr.rel (%p295) target = $region36
        $region35: #{tpu_custom_call.1} parent=11 // pred_region
          _
        $region36: #{tpu_custom_call.1} parent=11 // pred_fallthru
          _
      $region12: #{tpu_custom_call.1} parent=5 // pred_fallthru
        _
      %p298 = scmp.lt.s32.totalorder %s25, 2
      // Predicated region
      $region37: #{tpu_custom_call.1} parent=5 // pred_check
        %p299 = pneg %p298
      $region38: #{tpu_custom_call.1} parent=5 // pred_check_branch
        %301 = sbr.rel (%p299) target = $region40
      $region39: #{tpu_custom_call.1} parent=5 // pred_region
        // Predicated region
        $region41: #{tpu_custom_call.1} parent=39 // pred_check
          %p302 = pneg %p45
        $region42: #{tpu_custom_call.1} parent=39 // pred_check_branch
          %304 = sbr.rel (%p302) target = $region44
        $region43: #{tpu_custom_call.1} parent=39 // pred_region
          %s305 = sand.u32 %s35, 1
          %s306 = scalar_lea.sflag [#allocation3], %s305
          %s307 = sand.u32 %s35, 1
          %s308 = smul.addr %s307, 4
          %s309 = scalar_lea.vmem [#allocation2], %s308
          %s311 = ssub.s32 64, 64
          %312 = vsyncadd %s306, %s311
          %s313 = smul.addr %s25, 64
          %s314 = scalar_lea.hbm %s0, %s313
          %s316 = sshll.u32 %s309, 4
          %s317 = int_to_ptr.vmem [resolvable:$true] %s316
          %319 = dma.hbm_to_vmem [thread:$0]  %s314, 64, %s317, %s306
        $region44: #{tpu_custom_call.1} parent=39 // pred_fallthru
          _
        // Predicated region
        $region45: #{tpu_custom_call.1} parent=39 // pred_check
          %p320 = pneg %p71
        $region46: #{tpu_custom_call.1} parent=39 // pred_check_branch
          %322 = sbr.rel (%p320) target = $region48
        $region47: #{tpu_custom_call.1} parent=39 // pred_region
          %s323 = sand.u32 %s25, 1
          %s324 = scalar_lea.sflag [#allocation6], %s323
          %s325 = sand.u32 %s61, 1
          %s326 = smul.addr %s325, 4
          %s327 = scalar_lea.vmem [#allocation5], %s326
          %s329 = ssub.s32 64, 64
          %330 = vsyncadd %s324, %s329
          %s331 = smul.addr %s25, 64
          %s332 = scalar_lea.hbm %s1, %s331
          %s334 = sshll.u32 %s327, 4
          %s335 = int_to_ptr.vmem [resolvable:$true] %s334
          %337 = dma.hbm_to_vmem [thread:$0]  %s332, 64, %s335, %s324
        $region48: #{tpu_custom_call.1} parent=39 // pred_fallthru
          _
        // Predicated region
        $region49: #{tpu_custom_call.1} parent=39 // pred_check
          %p338 = pneg %p97
        $region50: #{tpu_custom_call.1} parent=39 // pred_check_branch
          %340 = sbr.rel (%p338) target = $region52
        $region51: #{tpu_custom_call.1} parent=39 // pred_region
          %s341 = sand.u32 %s25, 1
          %s342 = scalar_lea.sflag [#allocation6], %s341
          %s343 = sand.u32 %s87, 1
          %s344 = smul.addr %s343, 4
          %s345 = scalar_lea.vmem [#allocation7], %s344
          %s347 = ssub.s32 64, 64
          %348 = vsyncadd %s342, %s347
          %s349 = smul.addr %s25, 64
          %s350 = scalar_lea.hbm %s2, %s349
          %s352 = sshll.u32 %s345, 4
          %s353 = int_to_ptr.vmem [resolvable:$true] %s352
          %355 = dma.hbm_to_vmem [thread:$0]  %s350, 64, %s353, %s342
        $region52: #{tpu_custom_call.1} parent=39 // pred_fallthru
          _
      $region40: #{tpu_custom_call.1} parent=5 // pred_fallthru
        _
      %p356 = scmp.le.s32.totalorder 1, %s25
      %p357 = scmp.lt.s32.totalorder %s25, 3
      %p358 = pnand %p356, %p357
      %p359 = pneg %p358
      // Predicated region
      $region53: #{tpu_custom_call.1} parent=5 // pred_check
        _
      $region54: #{tpu_custom_call.1} parent=5 // pred_check_branch
        %361 = sbr.rel (%p358) target = $region56
      $region55: #{tpu_custom_call.1} parent=5 // pred_region
        %s362 = ssub.s32 %s25, 1
        %s363 = sand.u32 %s38, 1
        %s364 = scalar_lea.sflag [#allocation3], %s363
        %s365 = sand.u32 %s38, 1
        %s366 = smul.addr %s365, 4
        %s367 = scalar_lea.vmem [#allocation2], %s366
        // Predicated region
        $region57: #{tpu_custom_call.1} parent=55 // pred_check
          %p368 = pneg %p51
        $region58: #{tpu_custom_call.1} parent=55 // pred_check_branch
          %370 = sbr.rel (%p368) target = $region60
        $region59: #{tpu_custom_call.1} parent=55 // pred_region
          %371 = dma.done %s364, 64
        $region60: #{tpu_custom_call.1} parent=55 // pred_fallthru
          _
        %s372 = sand.u32 %s30, 1
        %s373 = scalar_lea.sflag [#allocation6], %s372
        %s374 = sand.u32 %s64, 1
        %s375 = smul.addr %s374, 4
        %s376 = scalar_lea.vmem [#allocation5], %s375
        // Predicated region
        $region61: #{tpu_custom_call.1} parent=55 // pred_check
          %p377 = pneg %p77
        $region62: #{tpu_custom_call.1} parent=55 // pred_check_branch
          %379 = sbr.rel (%p377) target = $region64
        $region63: #{tpu_custom_call.1} parent=55 // pred_region
          %380 = dma.done %s373, 64
        $region64: #{tpu_custom_call.1} parent=55 // pred_fallthru
          _
        %s381 = sand.u32 %s30, 1
        %s382 = scalar_lea.sflag [#allocation6], %s381
        %s383 = sand.u32 %s90, 1
        %s384 = smul.addr %s383, 4
        %s385 = scalar_lea.vmem [#allocation7], %s384
        // Predicated region
        $region65: #{tpu_custom_call.1} parent=55 // pred_check
          %p386 = pneg %p103
        $region66: #{tpu_custom_call.1} parent=55 // pred_check_branch
          %388 = sbr.rel (%p386) target = $region68
        $region67: #{tpu_custom_call.1} parent=55 // pred_region
          %389 = dma.done %s382, 64
        $region68: #{tpu_custom_call.1} parent=55 // pred_fallthru
          _
        // Predicated region
        $region69: #{tpu_custom_call.1} parent=55 // pred_check
          %p390 = pneg %p187
        $region70: #{tpu_custom_call.1} parent=55 // pred_check_branch
          %392 = sbr.rel (%p390) target = $region72
        $region71: #{tpu_custom_call.1} parent=55 // pred_region
          %393 = dma.done [#allocation9], 256
        $region72: #{tpu_custom_call.1} parent=55 // pred_fallthru
          _
        %s394 = sand.u32 %s38, 1
        %s395 = scalar_lea.sflag [#allocation3], %s394
        %s396 = sand.u32 %s38, 1
        %s397 = smul.addr %s396, 4
        %s398 = scalar_lea.vmem [#allocation2], %s397
        %p399 = pneg %p51
        %p400 = pneg %p48
        %s401 = sand.u32 %s30, 1
        %s402 = scalar_lea.sflag [#allocation6], %s401
        %s403 = sand.u32 %s64, 1
        %s404 = smul.addr %s403, 4
        %s405 = scalar_lea.vmem [#allocation5], %s404
        %p406 = pneg %p77
        %p407 = pneg %p74
        %s408 = sand.u32 %s30, 1
        %s409 = scalar_lea.sflag [#allocation6], %s408
        %s410 = sand.u32 %s90, 1
        %s411 = smul.addr %s410, 4
        %s412 = scalar_lea.vmem [#allocation7], %s411
        %p413 = pneg %p103
        %p414 = pneg %p100
        %p415 = pneg %p124
        %p416 = pneg %p121
        %p417 = pneg %p145
        %p418 = pneg %p142
        %p419 = pneg %p166
        %p420 = pneg %p163
        %p421 = pneg %p187
        %p422 = pneg %p184
        %p423 = pneg %p208
        %p424 = pneg %p205
        %p425 = pneg %p229
        %p426 = pneg %p226
        %p427 = pneg %p255
        %p428 = pneg %p252
        %s429 = sand.u32 %s242, 1
        %s430 = scalar_lea.sflag [#allocation4], %s429
        %s431 = sand.u32 %s242, 1
        %s432 = smul.addr %s431, 8
        %s433 = scalar_lea.vmem [#allocation10], %s432
        %v435 = vld [vmem:[%s3] sm:$0xf]
        %v436 = vld [vmem:[%s3 + $0x4] sm:$0xf]
        %v437 = vld [vmem:[%s3 + $0x8] sm:$0xf]
        %v438 = vld [vmem:[%s3 + $0xc] sm:$0xf]
        %v439 = vld [vmem:[%s4] sm:$0xf]
        %v440 = vld [vmem:[%s4 + $0x4] sm:$0xf]
        %v441 = vld [vmem:[%s4 + $0x8] sm:$0xf]
        %v442 = vld [vmem:[%s4 + $0xc] sm:$0xf]
        %v443 = vld [vmem:[%s5] sm:$0xf]
        %v444 = vld [vmem:[%s5 + $0x4] sm:$0xf]
        %v445 = vld [vmem:[%s5 + $0x8] sm:$0xf]
        %v446 = vld [vmem:[%s5 + $0xc] sm:$0xf]
        %v447 = vld [vmem:[#allocation8] sm:$0xf]
        %v448 = vld [vmem:[#allocation8 + $0x4] sm:$0xf]
        %v449 = vld [vmem:[#allocation8 + $0x8] sm:$0xf]
        %v450 = vld [vmem:[#allocation8 + $0xc] sm:$0xf]
        %v451 = vld [vmem:[%s7] sm:$0xff]
        %v452 = vld [vmem:[%s7 + $0x8] sm:$0xff]
        %v453 = vld [vmem:[%s7 + $0x10] sm:$0xff]
        %v454 = vld [vmem:[%s7 + $0x18] sm:$0xff]
        %v455 = vld [vmem:[%s8] sm:$0xff]
        %v456 = vld [vmem:[%s367] sm:$0xf]
        %v461 = vunpack.c.l.b16 %v435
        %v462 = vunpack.c.l.b16 %v436
        %v463 = vunpack.c.l.b16 %v437
        %v464 = vunpack.c.l.b16 %v438
        %v465 = vpack.c.b16 %v462, %v461
        %v466 = vpack.c.b16 %v464, %v463
        %vm469 = vcmask 261120
        %v471 = vsel %vm469, %v456, 0
        %473 = vmatprep.subr.bf16.mxu0 0
        %474 = vmatpush1.bf16.msra.mxu0 %v465
        %475 = vmatprep.subr.bf16.mxu0 0
        %476 = vmatpush1.bf16.msra.mxu0 %v466
        %477 = vmatprep.subr.bf16.mxu0 0
        %478 = vmatpush1.bf16.msra.mxu0 0
        %479 = vmatprep.subr.bf16.mxu0 0
        %480 = vmatpush1.bf16.msra.mxu0 0
        %481 = vmatprep.subr.bf16.mxu0 0
        %482 = vmatpush1.bf16.msra.mxu0 0
        %483 = vmatprep.subr.bf16.mxu0 0
        %484 = vmatpush1.bf16.msra.mxu0 0
        %485 = vmatprep.subr.bf16.mxu0 0
        %486 = vmatpush1.bf16.msra.mxu0 0
        %487 = vmatprep.subr.bf16.mxu0 0
        %488 = vmatpush1.bf16.msra.mxu0 0
        %489 = vmatprep.subr.bf16.mxu0 0
        %490 = vmatpush1.bf16.msra.mxu0 0
        %491 = vmatprep.subr.bf16.mxu0 0
        %492 = vmatpush1.bf16.msra.mxu0 0
        %493 = vmatprep.subr.bf16.mxu0 0
        %494 = vmatpush1.bf16.msra.mxu0 0
        %495 = vmatprep.subr.bf16.mxu0 0
        %496 = vmatpush1.bf16.msra.mxu0 0
        %497 = vmatprep.subr.bf16.mxu0 0
        %498 = vmatpush1.bf16.msra.mxu0 0
        %499 = vmatprep.subr.bf16.mxu0 0
        %500 = vmatpush1.bf16.msra.mxu0 0
        %501 = vmatprep.subr.bf16.mxu0 0
        %502 = vmatpush1.bf16.msra.mxu0 0
        %503 = vmatprep.subr.bf16.mxu0 0
        %504 = vmatpush1.bf16.msra.mxu0 0
        %505 = vmatprep.mubr.bf16.mxu0 0
        %506 = vmatmul.mubr.bf16.gmra.mrb[0].mxu0 %v471
        %v507 = vpop.f32.mrb[0].mxu0
        %v508 = vadd.f32 0.0, %v507
        %v509 = vpop.f32.mrb[0].mxu0
        %v510 = vpop.f32.mrb[0].mxu0
        %v511 = vpop.f32.mrb[0].mxu0
        %512 = vdwg.mxu0
        %v513 = vld [vmem:[%s385] sm:$0xf]
        %v518 = vunpack.c.l.b16 %v439
        %v519 = vunpack.c.l.b16 %v440
        %v520 = vunpack.c.l.b16 %v441
        %v521 = vunpack.c.l.b16 %v442
        %v522 = vpack.c.b16 %v519, %v518
        %v523 = vpack.c.b16 %v521, %v520
        %v527 = vsel %vm469, %v513, 0
        %529 = vmatprep.subr.bf16.mxu0 0
        %530 = vmatpush1.bf16.msra.mxu0 %v522
        %531 = vmatprep.subr.bf16.mxu0 0
        %532 = vmatpush1.bf16.msra.mxu0 %v523
        %533 = vmatprep.subr.bf16.mxu0 0
        %534 = vmatpush1.bf16.msra.mxu0 0
        %535 = vmatprep.subr.bf16.mxu0 0
        %536 = vmatpush1.bf16.msra.mxu0 0
        %537 = vmatprep.subr.bf16.mxu0 0
        %538 = vmatpush1.bf16.msra.mxu0 0
        %539 = vmatprep.subr.bf16.mxu0 0
        %540 = vmatpush1.bf16.msra.mxu0 0
        %541 = vmatprep.subr.bf16.mxu0 0
        %542 = vmatpush1.bf16.msra.mxu0 0
        %543 = vmatprep.subr.bf16.mxu0 0
        %544 = vmatpush1.bf16.msra.mxu0 0
        %545 = vmatprep.subr.bf16.mxu0 0
        %546 = vmatpush1.bf16.msra.mxu0 0
        %547 = vmatprep.subr.bf16.mxu0 0
        %548 = vmatpush1.bf16.msra.mxu0 0
        %549 = vmatprep.subr.bf16.mxu0 0
        %550 = vmatpush1.bf16.msra.mxu0 0
        %551 = vmatprep.subr.bf16.mxu0 0
        %552 = vmatpush1.bf16.msra.mxu0 0
        %553 = vmatprep.subr.bf16.mxu0 0
        %554 = vmatpush1.bf16.msra.mxu0 0
        %555 = vmatprep.subr.bf16.mxu0 0
        %556 = vmatpush1.bf16.msra.mxu0 0
        %557 = vmatprep.subr.bf16.mxu0 0
        %558 = vmatpush1.bf16.msra.mxu0 0
        %559 = vmatprep.subr.bf16.mxu0 0
        %560 = vmatpush1.bf16.msra.mxu0 0
        %561 = vmatprep.mubr.bf16.mxu0 0
        %562 = vmatmul.mubr.bf16.gmra.mrb[0].mxu0 %v527
        %v563 = vpop.f32.mrb[0].mxu0
        %v564 = vadd.f32 0.0, %v563
        %v565 = vpop.f32.mrb[0].mxu0
        %v566 = vpop.f32.mrb[0].mxu0
        %v567 = vpop.f32.mrb[0].mxu0
        %568 = vdwg.mxu0
        %v569 = vld [vmem:[%s376] sm:$0xf]
        %v571 = vsel %vm469, %v569, 0
        %573 = vmatprep.subr.bf16.mxu0 0
        %574 = vmatpush1.bf16.msra.mxu0 %v522
        %575 = vmatprep.subr.bf16.mxu0 0
        %576 = vmatpush1.bf16.msra.mxu0 %v523
        %577 = vmatprep.subr.bf16.mxu0 0
        %578 = vmatpush1.bf16.msra.mxu0 0
        %579 = vmatprep.subr.bf16.mxu0 0
        %580 = vmatpush1.bf16.msra.mxu0 0
        %581 = vmatprep.subr.bf16.mxu0 0
        %582 = vmatpush1.bf16.msra.mxu0 0
        %583 = vmatprep.subr.bf16.mxu0 0
        %584 = vmatpush1.bf16.msra.mxu0 0
        %585 = vmatprep.subr.bf16.mxu0 0
        %586 = vmatpush1.bf16.msra.mxu0 0
        %587 = vmatprep.subr.bf16.mxu0 0
        %588 = vmatpush1.bf16.msra.mxu0 0
        %589 = vmatprep.subr.bf16.mxu0 0
        %590 = vmatpush1.bf16.msra.mxu0 0
        %591 = vmatprep.subr.bf16.mxu0 0
        %592 = vmatpush1.bf16.msra.mxu0 0
        %593 = vmatprep.subr.bf16.mxu0 0
        %594 = vmatpush1.bf16.msra.mxu0 0
        %595 = vmatprep.subr.bf16.mxu0 0
        %596 = vmatpush1.bf16.msra.mxu0 0
        %597 = vmatprep.subr.bf16.mxu0 0
        %598 = vmatpush1.bf16.msra.mxu0 0
        %599 = vmatprep.subr.bf16.mxu0 0
        %600 = vmatpush1.bf16.msra.mxu0 0
        %601 = vmatprep.subr.bf16.mxu0 0
        %602 = vmatpush1.bf16.msra.mxu0 0
        %603 = vmatprep.subr.bf16.mxu0 0
        %604 = vmatpush1.bf16.msra.mxu0 0
        %605 = vmatprep.mubr.bf16.mxu0 0
        %606 = vmatmul.mubr.bf16.gmra.mrb[0].mxu0 %v571
        %v607 = vpop.f32.mrb[0].mxu0
        %v608 = vadd.f32 %v564, %v607
        %v609 = vpop.f32.mrb[0].mxu0
        %v610 = vpop.f32.mrb[0].mxu0
        %v611 = vpop.f32.mrb[0].mxu0
        %612 = vdwg.mxu0
        %v613 = vmul.f32 %v508, %v608
        %v615 = vsel %vm469, %v613, 0
        %617 = vmatprep.subr.mxu0 0.0
        %618 = vmatpush1.msra.mxu0 %v451
        %619 = vmatprep.subr.mxu0 0.0
        %620 = vmatpush1.msra.mxu0 %v452
        %621 = vmatprep.subr.mxu0 0.0
        %622 = vmatpush1.msra.mxu0 %v453
        %623 = vmatprep.subr.mxu0 0.0
        %624 = vmatpush1.msra.mxu0 %v454
        %625 = vmatprep.subr.mxu0 0.0
        %626 = vmatpush1.msra.mxu0 0.0
        %627 = vmatprep.subr.mxu0 0.0
        %628 = vmatpush1.msra.mxu0 0.0
        %629 = vmatprep.subr.mxu0 0.0
        %630 = vmatpush1.msra.mxu0 0.0
        %631 = vmatprep.subr.mxu0 0.0
        %632 = vmatpush1.msra.mxu0 0.0
        %633 = vmatprep.subr.mxu0 0.0
        %634 = vmatpush1.msra.mxu0 0.0
        %635 = vmatprep.subr.mxu0 0.0
        %636 = vmatpush1.msra.mxu0 0.0
        %637 = vmatprep.subr.mxu0 0.0
        %638 = vmatpush1.msra.mxu0 0.0
        %639 = vmatprep.subr.mxu0 0.0
        %640 = vmatpush1.msra.mxu0 0.0
        %641 = vmatprep.subr.mxu0 0.0
        %642 = vmatpush1.msra.mxu0 0.0
        %643 = vmatprep.subr.mxu0 0.0
        %644 = vmatpush1.msra.mxu0 0.0
        %645 = vmatprep.subr.mxu0 0.0
        %646 = vmatpush1.msra.mxu0 0.0
        %647 = vmatprep.subr.mxu0 0.0
        %648 = vmatpush1.msra.mxu0 0.0
        %649 = vmatprep.subr.mxu0 0.0
        %650 = vmatpush1.msra.mxu0 0.0
        %651 = vmatprep.subr.mxu0 0.0
        %652 = vmatpush1.msra.mxu0 0.0
        %653 = vmatprep.subr.mxu0 0.0
        %654 = vmatpush1.msra.mxu0 0.0
        %655 = vmatprep.subr.mxu0 0.0
        %656 = vmatpush1.msra.mxu0 0.0
        %657 = vmatprep.subr.mxu0 0.0
        %658 = vmatpush1.msra.mxu0 0.0
        %659 = vmatprep.subr.mxu0 0.0
        %660 = vmatpush1.msra.mxu0 0.0
        %661 = vmatprep.subr.mxu0 0.0
        %662 = vmatpush1.msra.mxu0 0.0
        %663 = vmatprep.subr.mxu0 0.0
        %664 = vmatpush1.msra.mxu0 0.0
        %665 = vmatprep.subr.mxu0 0.0
        %666 = vmatpush1.msra.mxu0 0.0
        %667 = vmatprep.subr.mxu0 0.0
        %668 = vmatpush1.msra.mxu0 0.0
        %669 = vmatprep.subr.mxu0 0.0
        %670 = vmatpush1.msra.mxu0 0.0
        %671 = vmatprep.subr.mxu0 0.0
        %672 = vmatpush1.msra.mxu0 0.0
        %673 = vmatprep.subr.mxu0 0.0
        %674 = vmatpush1.msra.mxu0 0.0
        %675 = vmatprep.subr.mxu0 0.0
        %676 = vmatpush1.msra.mxu0 0.0
        %677 = vmatprep.subr.mxu0 0.0
        %678 = vmatpush1.msra.mxu0 0.0
        %679 = vmatprep.subr.mxu0 0.0
        %680 = vmatpush1.msra.mxu0 0.0
        %681 = vmatprep.mubr.f32.mxu0 0.0
        %682 = vmatmul.mubr.f32.gmra.mrb[0].mxu0 %v615
        %v683 = vpop.f32.mrb[0].mxu0
        %v684 = vadd.f32 0.0, %v683
        %v685 = vpop.f32.mrb[0].mxu0
        %686 = vdwg.mxu0
        %v688 = vunpack.c.l.b16 %v569
        %v689 = vpack.c.b16 %v688, %v688
        %690 = vrot.lane.b32.xlu0 %v689, 96
        %v691 = vpop.permute.xlu0 %690
        %v693 = vsel %vm469, %v691, 0
        %695 = vmatprep.subr.bf16.mxu0 0
        %696 = vmatpush1.bf16.msra.mxu0 %v522
        %697 = vmatprep.subr.bf16.mxu0 0
        %698 = vmatpush1.bf16.msra.mxu0 %v523
        %699 = vmatprep.subr.bf16.mxu0 0
        %700 = vmatpush1.bf16.msra.mxu0 0
        %701 = vmatprep.subr.bf16.mxu0 0
        %702 = vmatpush1.bf16.msra.mxu0 0
        %703 = vmatprep.subr.bf16.mxu0 0
        %704 = vmatpush1.bf16.msra.mxu0 0
        %705 = vmatprep.subr.bf16.mxu0 0
        %706 = vmatpush1.bf16.msra.mxu0 0
        %707 = vmatprep.subr.bf16.mxu0 0
        %708 = vmatpush1.bf16.msra.mxu0 0
        %709 = vmatprep.subr.bf16.mxu0 0
        %710 = vmatpush1.bf16.msra.mxu0 0
        %711 = vmatprep.subr.bf16.mxu0 0
        %712 = vmatpush1.bf16.msra.mxu0 0
        %713 = vmatprep.subr.bf16.mxu0 0
        %714 = vmatpush1.bf16.msra.mxu0 0
        %715 = vmatprep.subr.bf16.mxu0 0
        %716 = vmatpush1.bf16.msra.mxu0 0
        %717 = vmatprep.subr.bf16.mxu0 0
        %718 = vmatpush1.bf16.msra.mxu0 0
        %719 = vmatprep.subr.bf16.mxu0 0
        %720 = vmatpush1.bf16.msra.mxu0 0
        %721 = vmatprep.subr.bf16.mxu0 0
        %722 = vmatpush1.bf16.msra.mxu0 0
        %723 = vmatprep.subr.bf16.mxu0 0
        %724 = vmatpush1.bf16.msra.mxu0 0
        %725 = vmatprep.subr.bf16.mxu0 0
        %726 = vmatpush1.bf16.msra.mxu0 0
        %727 = vmatprep.mubr.bf16.mxu0 0
        %728 = vmatmul.mubr.bf16.gmra.mrb[0].mxu0 %v693
        %v729 = vpop.f32.mrb[0].mxu0
        %v730 = vadd.f32 %v564, %v729
        %v731 = vpop.f32.mrb[0].mxu0
        %v732 = vpop.f32.mrb[0].mxu0
        %v733 = vpop.f32.mrb[0].mxu0
        %734 = vdwg.mxu0
        %v735 = vmul.f32 %v508, %v730
        %v737 = vsel %vm469, %v735, 0
        %739 = vmatprep.subr.mxu0 0.0
        %740 = vmatpush1.msra.mxu0 %v451
        %741 = vmatprep.subr.mxu0 0.0
        %742 = vmatpush1.msra.mxu0 %v452
        %743 = vmatprep.subr.mxu0 0.0
        %744 = vmatpush1.msra.mxu0 %v453
        %745 = vmatprep.subr.mxu0 0.0
        %746 = vmatpush1.msra.mxu0 %v454
        %747 = vmatprep.subr.mxu0 0.0
        %748 = vmatpush1.msra.mxu0 0.0
        %749 = vmatprep.subr.mxu0 0.0
        %750 = vmatpush1.msra.mxu0 0.0
        %751 = vmatprep.subr.mxu0 0.0
        %752 = vmatpush1.msra.mxu0 0.0
        %753 = vmatprep.subr.mxu0 0.0
        %754 = vmatpush1.msra.mxu0 0.0
        %755 = vmatprep.subr.mxu0 0.0
        %756 = vmatpush1.msra.mxu0 0.0
        %757 = vmatprep.subr.mxu0 0.0
        %758 = vmatpush1.msra.mxu0 0.0
        %759 = vmatprep.subr.mxu0 0.0
        %760 = vmatpush1.msra.mxu0 0.0
        %761 = vmatprep.subr.mxu0 0.0
        %762 = vmatpush1.msra.mxu0 0.0
        %763 = vmatprep.subr.mxu0 0.0
        %764 = vmatpush1.msra.mxu0 0.0
        %765 = vmatprep.subr.mxu0 0.0
        %766 = vmatpush1.msra.mxu0 0.0
        %767 = vmatprep.subr.mxu0 0.0
        %768 = vmatpush1.msra.mxu0 0.0
        %769 = vmatprep.subr.mxu0 0.0
        %770 = vmatpush1.msra.mxu0 0.0
        %771 = vmatprep.subr.mxu0 0.0
        %772 = vmatpush1.msra.mxu0 0.0
        %773 = vmatprep.subr.mxu0 0.0
        %774 = vmatpush1.msra.mxu0 0.0
        %775 = vmatprep.subr.mxu0 0.0
        %776 = vmatpush1.msra.mxu0 0.0
        %777 = vmatprep.subr.mxu0 0.0
        %778 = vmatpush1.msra.mxu0 0.0
        %779 = vmatprep.subr.mxu0 0.0
        %780 = vmatpush1.msra.mxu0 0.0
        %781 = vmatprep.subr.mxu0 0.0
        %782 = vmatpush1.msra.mxu0 0.0
        %783 = vmatprep.subr.mxu0 0.0
        %784 = vmatpush1.msra.mxu0 0.0
        %785 = vmatprep.subr.mxu0 0.0
        %786 = vmatpush1.msra.mxu0 0.0
        %787 = vmatprep.subr.mxu0 0.0
        %788 = vmatpush1.msra.mxu0 0.0
        %789 = vmatprep.subr.mxu0 0.0
        %790 = vmatpush1.msra.mxu0 0.0
        %791 = vmatprep.subr.mxu0 0.0
        %792 = vmatpush1.msra.mxu0 0.0
        %793 = vmatprep.subr.mxu0 0.0
        %794 = vmatpush1.msra.mxu0 0.0
        %795 = vmatprep.subr.mxu0 0.0
        %796 = vmatpush1.msra.mxu0 0.0
        %797 = vmatprep.subr.mxu0 0.0
        %798 = vmatpush1.msra.mxu0 0.0
        %799 = vmatprep.subr.mxu0 0.0
        %800 = vmatpush1.msra.mxu0 0.0
        %801 = vmatprep.subr.mxu0 0.0
        %802 = vmatpush1.msra.mxu0 0.0
        %803 = vmatprep.mubr.f32.mxu0 0.0
        %804 = vmatmul.mubr.f32.gmra.mrb[0].mxu0 %v737
        %v805 = vpop.f32.mrb[0].mxu0
        %v806 = vadd.f32 0.0, %v805
        %v807 = vpop.f32.mrb[0].mxu0
        %808 = vdwg.mxu0
        %809 = vrot.lane.b32.xlu0 %v689, 64
        %v810 = vpop.permute.xlu0 %809
        %v812 = vsel %vm469, %v810, 0
        %814 = vmatprep.subr.bf16.mxu0 0
        %815 = vmatpush1.bf16.msra.mxu0 %v522
        %816 = vmatprep.subr.bf16.mxu0 0
        %817 = vmatpush1.bf16.msra.mxu0 %v523
        %818 = vmatprep.subr.bf16.mxu0 0
        %819 = vmatpush1.bf16.msra.mxu0 0
        %820 = vmatprep.subr.bf16.mxu0 0
        %821 = vmatpush1.bf16.msra.mxu0 0
        %822 = vmatprep.subr.bf16.mxu0 0
        %823 = vmatpush1.bf16.msra.mxu0 0
        %824 = vmatprep.subr.bf16.mxu0 0
        %825 = vmatpush1.bf16.msra.mxu0 0
        %826 = vmatprep.subr.bf16.mxu0 0
        %827 = vmatpush1.bf16.msra.mxu0 0
        %828 = vmatprep.subr.bf16.mxu0 0
        %829 = vmatpush1.bf16.msra.mxu0 0
        %830 = vmatprep.subr.bf16.mxu0 0
        %831 = vmatpush1.bf16.msra.mxu0 0
        %832 = vmatprep.subr.bf16.mxu0 0
        %833 = vmatpush1.bf16.msra.mxu0 0
        %834 = vmatprep.subr.bf16.mxu0 0
        %835 = vmatpush1.bf16.msra.mxu0 0
        %836 = vmatprep.subr.bf16.mxu0 0
        %837 = vmatpush1.bf16.msra.mxu0 0
        %838 = vmatprep.subr.bf16.mxu0 0
        %839 = vmatpush1.bf16.msra.mxu0 0
        %840 = vmatprep.subr.bf16.mxu0 0
        %841 = vmatpush1.bf16.msra.mxu0 0
        %842 = vmatprep.subr.bf16.mxu0 0
        %843 = vmatpush1.bf16.msra.mxu0 0
        %844 = vmatprep.subr.bf16.mxu0 0
        %845 = vmatpush1.bf16.msra.mxu0 0
        %846 = vmatprep.mubr.bf16.mxu0 0
        %847 = vmatmul.mubr.bf16.gmra.mrb[0].mxu0 %v812
        %v848 = vpop.f32.mrb[0].mxu0
        %v849 = vadd.f32 %v564, %v848
        %v850 = vpop.f32.mrb[0].mxu0
        %v851 = vpop.f32.mrb[0].mxu0
        %v852 = vpop.f32.mrb[0].mxu0
        %853 = vdwg.mxu0
        %v854 = vmul.f32 %v508, %v849
        %v856 = vsel %vm469, %v854, 0
        %858 = vmatprep.subr.mxu0 0.0
        %859 = vmatpush1.msra.mxu0 %v451
        %860 = vmatprep.subr.mxu0 0.0
        %861 = vmatpush1.msra.mxu0 %v452
        %862 = vmatprep.subr.mxu0 0.0
        %863 = vmatpush1.msra.mxu0 %v453
        %864 = vmatprep.subr.mxu0 0.0
        %865 = vmatpush1.msra.mxu0 %v454
        %866 = vmatprep.subr.mxu0 0.0
        %867 = vmatpush1.msra.mxu0 0.0
        %868 = vmatprep.subr.mxu0 0.0
        %869 = vmatpush1.msra.mxu0 0.0
        %870 = vmatprep.subr.mxu0 0.0
        %871 = vmatpush1.msra.mxu0 0.0
        %872 = vmatprep.subr.mxu0 0.0
        %873 = vmatpush1.msra.mxu0 0.0
        %874 = vmatprep.subr.mxu0 0.0
        %875 = vmatpush1.msra.mxu0 0.0
        %876 = vmatprep.subr.mxu0 0.0
        %877 = vmatpush1.msra.mxu0 0.0
        %878 = vmatprep.subr.mxu0 0.0
        %879 = vmatpush1.msra.mxu0 0.0
        %880 = vmatprep.subr.mxu0 0.0
        %881 = vmatpush1.msra.mxu0 0.0
        %882 = vmatprep.subr.mxu0 0.0
        %883 = vmatpush1.msra.mxu0 0.0
        %884 = vmatprep.subr.mxu0 0.0
        %885 = vmatpush1.msra.mxu0 0.0
        %886 = vmatprep.subr.mxu0 0.0
        %887 = vmatpush1.msra.mxu0 0.0
        %888 = vmatprep.subr.mxu0 0.0
        %889 = vmatpush1.msra.mxu0 0.0
        %890 = vmatprep.subr.mxu0 0.0
        %891 = vmatpush1.msra.mxu0 0.0
        %892 = vmatprep.subr.mxu0 0.0
        %893 = vmatpush1.msra.mxu0 0.0
        %894 = vmatprep.subr.mxu0 0.0
        %895 = vmatpush1.msra.mxu0 0.0
        %896 = vmatprep.subr.mxu0 0.0
        %897 = vmatpush1.msra.mxu0 0.0
        %898 = vmatprep.subr.mxu0 0.0
        %899 = vmatpush1.msra.mxu0 0.0
        %900 = vmatprep.subr.mxu0 0.0
        %901 = vmatpush1.msra.mxu0 0.0
        %902 = vmatprep.subr.mxu0 0.0
        %903 = vmatpush1.msra.mxu0 0.0
        %904 = vmatprep.subr.mxu0 0.0
        %905 = vmatpush1.msra.mxu0 0.0
        %906 = vmatprep.subr.mxu0 0.0
        %907 = vmatpush1.msra.mxu0 0.0
        %908 = vmatprep.subr.mxu0 0.0
        %909 = vmatpush1.msra.mxu0 0.0
        %910 = vmatprep.subr.mxu0 0.0
        %911 = vmatpush1.msra.mxu0 0.0
        %912 = vmatprep.subr.mxu0 0.0
        %913 = vmatpush1.msra.mxu0 0.0
        %914 = vmatprep.subr.mxu0 0.0
        %915 = vmatpush1.msra.mxu0 0.0
        %916 = vmatprep.subr.mxu0 0.0
        %917 = vmatpush1.msra.mxu0 0.0
        %918 = vmatprep.subr.mxu0 0.0
        %919 = vmatpush1.msra.mxu0 0.0
        %920 = vmatprep.subr.mxu0 0.0
        %921 = vmatpush1.msra.mxu0 0.0
        %922 = vmatprep.mubr.f32.mxu0 0.0
        %923 = vmatmul.mubr.f32.gmra.mrb[0].mxu0 %v856
        %v924 = vpop.f32.mrb[0].mxu0
        %v925 = vadd.f32 0.0, %v924
        %v926 = vpop.f32.mrb[0].mxu0
        %927 = vdwg.mxu0
        %928 = vrot.lane.b32.xlu0 %v689, 32
        %v929 = vpop.permute.xlu0 %928
        %v931 = vsel %vm469, %v929, 0
        %933 = vmatprep.subr.bf16.mxu0 0
        %934 = vmatpush1.bf16.msra.mxu0 %v522
        %935 = vmatprep.subr.bf16.mxu0 0
        %936 = vmatpush1.bf16.msra.mxu0 %v523
        %937 = vmatprep.subr.bf16.mxu0 0
        %938 = vmatpush1.bf16.msra.mxu0 0
        %939 = vmatprep.subr.bf16.mxu0 0
        %940 = vmatpush1.bf16.msra.mxu0 0
        %941 = vmatprep.subr.bf16.mxu0 0
        %942 = vmatpush1.bf16.msra.mxu0 0
        %943 = vmatprep.subr.bf16.mxu0 0
        %944 = vmatpush1.bf16.msra.mxu0 0
        %945 = vmatprep.subr.bf16.mxu0 0
        %946 = vmatpush1.bf16.msra.mxu0 0
        %947 = vmatprep.subr.bf16.mxu0 0
        %948 = vmatpush1.bf16.msra.mxu0 0
        %949 = vmatprep.subr.bf16.mxu0 0
        %950 = vmatpush1.bf16.msra.mxu0 0
        %951 = vmatprep.subr.bf16.mxu0 0
        %952 = vmatpush1.bf16.msra.mxu0 0
        %953 = vmatprep.subr.bf16.mxu0 0
        %954 = vmatpush1.bf16.msra.mxu0 0
        %955 = vmatprep.subr.bf16.mxu0 0
        %956 = vmatpush1.bf16.msra.mxu0 0
        %957 = vmatprep.subr.bf16.mxu0 0
        %958 = vmatpush1.bf16.msra.mxu0 0
        %959 = vmatprep.subr.bf16.mxu0 0
        %960 = vmatpush1.bf16.msra.mxu0 0
        %961 = vmatprep.subr.bf16.mxu0 0
        %962 = vmatpush1.bf16.msra.mxu0 0
        %963 = vmatprep.subr.bf16.mxu0 0
        %964 = vmatpush1.bf16.msra.mxu0 0
        %965 = vmatprep.mubr.bf16.mxu0 0
        %966 = vmatmul.mubr.bf16.gmra.mrb[0].mxu0 %v931
        %v967 = vpop.f32.mrb[0].mxu0
        %v968 = vadd.f32 %v564, %v967
        %v969 = vpop.f32.mrb[0].mxu0
        %v970 = vpop.f32.mrb[0].mxu0
        %v971 = vpop.f32.mrb[0].mxu0
        %972 = vdwg.mxu0
        %v973 = vmul.f32 %v508, %v968
        %v975 = vsel %vm469, %v973, 0
        %977 = vmatprep.subr.mxu0 0.0
        %978 = vmatpush1.msra.mxu0 %v451
        %979 = vmatprep.subr.mxu0 0.0
        %980 = vmatpush1.msra.mxu0 %v452
        %981 = vmatprep.subr.mxu0 0.0
        %982 = vmatpush1.msra.mxu0 %v453
        %983 = vmatprep.subr.mxu0 0.0
        %984 = vmatpush1.msra.mxu0 %v454
        %985 = vmatprep.subr.mxu0 0.0
        %986 = vmatpush1.msra.mxu0 0.0
        %987 = vmatprep.subr.mxu0 0.0
        %988 = vmatpush1.msra.mxu0 0.0
        %989 = vmatprep.subr.mxu0 0.0
        %990 = vmatpush1.msra.mxu0 0.0
        %991 = vmatprep.subr.mxu0 0.0
        %992 = vmatpush1.msra.mxu0 0.0
        %993 = vmatprep.subr.mxu0 0.0
        %994 = vmatpush1.msra.mxu0 0.0
        %995 = vmatprep.subr.mxu0 0.0
        %996 = vmatpush1.msra.mxu0 0.0
        %997 = vmatprep.subr.mxu0 0.0
        %998 = vmatpush1.msra.mxu0 0.0
        %999 = vmatprep.subr.mxu0 0.0
        %1000 = vmatpush1.msra.mxu0 0.0
        %1001 = vmatprep.subr.mxu0 0.0
        %1002 = vmatpush1.msra.mxu0 0.0
        %1003 = vmatprep.subr.mxu0 0.0
        %1004 = vmatpush1.msra.mxu0 0.0
        %1005 = vmatprep.subr.mxu0 0.0
        %1006 = vmatpush1.msra.mxu0 0.0
        %1007 = vmatprep.subr.mxu0 0.0
        %1008 = vmatpush1.msra.mxu0 0.0
        %1009 = vmatprep.subr.mxu0 0.0
        %1010 = vmatpush1.msra.mxu0 0.0
        %1011 = vmatprep.subr.mxu0 0.0
        %1012 = vmatpush1.msra.mxu0 0.0
        %1013 = vmatprep.subr.mxu0 0.0
        %1014 = vmatpush1.msra.mxu0 0.0
        %1015 = vmatprep.subr.mxu0 0.0
        %1016 = vmatpush1.msra.mxu0 0.0
        %1017 = vmatprep.subr.mxu0 0.0
        %1018 = vmatpush1.msra.mxu0 0.0
        %1019 = vmatprep.subr.mxu0 0.0
        %1020 = vmatpush1.msra.mxu0 0.0
        %1021 = vmatprep.subr.mxu0 0.0
        %1022 = vmatpush1.msra.mxu0 0.0
        %1023 = vmatprep.subr.mxu0 0.0
        %1024 = vmatpush1.msra.mxu0 0.0
        %1025 = vmatprep.subr.mxu0 0.0
        %1026 = vmatpush1.msra.mxu0 0.0
        %1027 = vmatprep.subr.mxu0 0.0
        %1028 = vmatpush1.msra.mxu0 0.0
        %1029 = vmatprep.subr.mxu0 0.0
        %1030 = vmatpush1.msra.mxu0 0.0
        %1031 = vmatprep.subr.mxu0 0.0
        %1032 = vmatpush1.msra.mxu0 0.0
        %1033 = vmatprep.subr.mxu0 0.0
        %1034 = vmatpush1.msra.mxu0 0.0
        %1035 = vmatprep.subr.mxu0 0.0
        %1036 = vmatpush1.msra.mxu0 0.0
        %1037 = vmatprep.subr.mxu0 0.0
        %1038 = vmatpush1.msra.mxu0 0.0
        %1039 = vmatprep.subr.mxu0 0.0
        %1040 = vmatpush1.msra.mxu0 0.0
        %1041 = vmatprep.mubr.f32.mxu0 0.0
        %1042 = vmatmul.mubr.f32.gmra.mrb[0].mxu0 %v975
        %v1043 = vpop.f32.mrb[0].mxu0
        %v1044 = vadd.f32 0.0, %v1043
        %v1045 = vpop.f32.mrb[0].mxu0
        %1046 = vdwg.mxu0
        %v1047 = vmax.f32 %v684, %v806
        %v1048 = vmax.f32 %v1047, %v925
        %v1049 = vmax.f32 %v1048, %v1044
        %v1050 = vsub.f32 %v684, %v1049
        %v1051 = vmul.f32 %v1050, 1.442695
        %v1052 = vpow.pop %v1051
        %v1053 = vsub.f32 %v806, %v1049
        %v1054 = vmul.f32 %v1053, 1.442695
        %v1055 = vpow.pop %v1054
        %v1056 = vsub.f32 %v925, %v1049
        %v1057 = vmul.f32 %v1056, 1.442695
        %v1058 = vpow.pop %v1057
        %v1059 = vsub.f32 %v1044, %v1049
        %v1060 = vmul.f32 %v1059, 1.442695
        %v1061 = vpow.pop %v1060
        %v1062 = vadd.f32 %v1052, %v1055
        %v1063 = vadd.f32 %v1062, %v1058
        %v1064 = vadd.f32 %v1063, %v1061
        %v1065 = vrcp.pop %v1064
        %v1070 = vunpack.c.l.b16 %v443
        %v1071 = vunpack.c.l.b16 %v444
        %v1072 = vunpack.c.l.b16 %v445
        %v1073 = vunpack.c.l.b16 %v446
        %v1074 = vpack.c.b16 %v1071, %v1070
        %v1075 = vpack.c.b16 %v1073, %v1072
        %1078 = vmatprep.subr.bf16.mxu0 0
        %1079 = vmatpush1.bf16.msra.mxu0 %v1074
        %1080 = vmatprep.subr.bf16.mxu0 0
        %1081 = vmatpush1.bf16.msra.mxu0 %v1075
        %1082 = vmatprep.subr.bf16.mxu0 0
        %1083 = vmatpush1.bf16.msra.mxu0 0
        %1084 = vmatprep.subr.bf16.mxu0 0
        %1085 = vmatpush1.bf16.msra.mxu0 0
        %1086 = vmatprep.subr.bf16.mxu0 0
        %1087 = vmatpush1.bf16.msra.mxu0 0
        %1088 = vmatprep.subr.bf16.mxu0 0
        %1089 = vmatpush1.bf16.msra.mxu0 0
        %1090 = vmatprep.subr.bf16.mxu0 0
        %1091 = vmatpush1.bf16.msra.mxu0 0
        %1092 = vmatprep.subr.bf16.mxu0 0
        %1093 = vmatpush1.bf16.msra.mxu0 0
        %1094 = vmatprep.subr.bf16.mxu0 0
        %1095 = vmatpush1.bf16.msra.mxu0 0
        %1096 = vmatprep.subr.bf16.mxu0 0
        %1097 = vmatpush1.bf16.msra.mxu0 0
        %1098 = vmatprep.subr.bf16.mxu0 0
        %1099 = vmatpush1.bf16.msra.mxu0 0
        %1100 = vmatprep.subr.bf16.mxu0 0
        %1101 = vmatpush1.bf16.msra.mxu0 0
        %1102 = vmatprep.subr.bf16.mxu0 0
        %1103 = vmatpush1.bf16.msra.mxu0 0
        %1104 = vmatprep.subr.bf16.mxu0 0
        %1105 = vmatpush1.bf16.msra.mxu0 0
        %1106 = vmatprep.subr.bf16.mxu0 0
        %1107 = vmatpush1.bf16.msra.mxu0 0
        %1108 = vmatprep.subr.bf16.mxu0 0
        %1109 = vmatpush1.bf16.msra.mxu0 0
        %1110 = vmatprep.mubr.bf16.mxu0 0
        %1111 = vmatmul.mubr.bf16.gmra.mrb[0].mxu0 %v571
        %v1112 = vpop.f32.mrb[0].mxu0
        %v1113 = vadd.f32 0.0, %v1112
        %v1114 = vpop.f32.mrb[0].mxu0
        %v1115 = vpop.f32.mrb[0].mxu0
        %v1116 = vpop.f32.mrb[0].mxu0
        %1117 = vdwg.mxu0
        %v1118 = vmul.f32 %v1052, %v1065
        %vm1119 = vcmask 64512
        %v1121 = vsel %vm1119, %v1118, 0
        %1123 = vmatprep.subr.mxu0 0.0
        %1124 = vmatpush1.msra.mxu0 %v455
        %1125 = vmatprep.subr.mxu0 0.0
        %1126 = vmatpush1.msra.mxu0 0.0
        %1127 = vmatprep.subr.mxu0 0.0
        %1128 = vmatpush1.msra.mxu0 0.0
        %1129 = vmatprep.subr.mxu0 0.0
        %1130 = vmatpush1.msra.mxu0 0.0
        %1131 = vmatprep.subr.mxu0 0.0
        %1132 = vmatpush1.msra.mxu0 0.0
        %1133 = vmatprep.subr.mxu0 0.0
        %1134 = vmatpush1.msra.mxu0 0.0
        %1135 = vmatprep.subr.mxu0 0.0
        %1136 = vmatpush1.msra.mxu0 0.0
        %1137 = vmatprep.subr.mxu0 0.0
        %1138 = vmatpush1.msra.mxu0 0.0
        %1139 = vmatprep.subr.mxu0 0.0
        %1140 = vmatpush1.msra.mxu0 0.0
        %1141 = vmatprep.subr.mxu0 0.0
        %1142 = vmatpush1.msra.mxu0 0.0
        %1143 = vmatprep.subr.mxu0 0.0
        %1144 = vmatpush1.msra.mxu0 0.0
        %1145 = vmatprep.subr.mxu0 0.0
        %1146 = vmatpush1.msra.mxu0 0.0
        %1147 = vmatprep.subr.mxu0 0.0
        %1148 = vmatpush1.msra.mxu0 0.0
        %1149 = vmatprep.subr.mxu0 0.0
        %1150 = vmatpush1.msra.mxu0 0.0
        %1151 = vmatprep.subr.mxu0 0.0
        %1152 = vmatpush1.msra.mxu0 0.0
        %1153 = vmatprep.subr.mxu0 0.0
        %1154 = vmatpush1.msra.mxu0 0.0
        %1155 = vmatprep.subr.mxu0 0.0
        %1156 = vmatpush1.msra.mxu0 0.0
        %1157 = vmatprep.subr.mxu0 0.0
        %1158 = vmatpush1.msra.mxu0 0.0
        %1159 = vmatprep.subr.mxu0 0.0
        %1160 = vmatpush1.msra.mxu0 0.0
        %1161 = vmatprep.subr.mxu0 0.0
        %1162 = vmatpush1.msra.mxu0 0.0
        %1163 = vmatprep.subr.mxu0 0.0
        %1164 = vmatpush1.msra.mxu0 0.0
        %1165 = vmatprep.subr.mxu0 0.0
        %1166 = vmatpush1.msra.mxu0 0.0
        %1167 = vmatprep.subr.mxu0 0.0
        %1168 = vmatpush1.msra.mxu0 0.0
        %1169 = vmatprep.subr.mxu0 0.0
        %1170 = vmatpush1.msra.mxu0 0.0
        %1171 = vmatprep.subr.mxu0 0.0
        %1172 = vmatpush1.msra.mxu0 0.0
        %1173 = vmatprep.subr.mxu0 0.0
        %1174 = vmatpush1.msra.mxu0 0.0
        %1175 = vmatprep.subr.mxu0 0.0
        %1176 = vmatpush1.msra.mxu0 0.0
        %1177 = vmatprep.subr.mxu0 0.0
        %1178 = vmatpush1.msra.mxu0 0.0
        %1179 = vmatprep.subr.mxu0 0.0
        %1180 = vmatpush1.msra.mxu0 0.0
        %1181 = vmatprep.subr.mxu0 0.0
        %1182 = vmatpush1.msra.mxu0 0.0
        %1183 = vmatprep.subr.mxu0 0.0
        %1184 = vmatpush1.msra.mxu0 0.0
        %1185 = vmatprep.subr.mxu0 0.0
        %1186 = vmatpush1.msra.mxu0 0.0
        %1187 = vmatprep.mubr.f32.mxu0 0.0
        %1188 = vmatmul.mubr.f32.gmra.mrb[0].mxu0 %v1121
        %v1189 = vpop.f32.mrb[0].mxu0
        %v1190 = vadd.f32 0.0, %v1189
        %v1191 = vpop.f32.mrb[0].mxu0
        %1192 = vdwg.mxu0
        %v1193 = vmul.f32 %v1113, %v1190
        %v1194 = vadd.f32 %v1193, 0.0
        %1195 = vmatprep.subr.bf16.mxu0 0
        %1196 = vmatpush1.bf16.msra.mxu0 %v1074
        %1197 = vmatprep.subr.bf16.mxu0 0
        %1198 = vmatpush1.bf16.msra.mxu0 %v1075
        %1199 = vmatprep.subr.bf16.mxu0 0
        %1200 = vmatpush1.bf16.msra.mxu0 0
        %1201 = vmatprep.subr.bf16.mxu0 0
        %1202 = vmatpush1.bf16.msra.mxu0 0
        %1203 = vmatprep.subr.bf16.mxu0 0
        %1204 = vmatpush1.bf16.msra.mxu0 0
        %1205 = vmatprep.subr.bf16.mxu0 0
        %1206 = vmatpush1.bf16.msra.mxu0 0
        %1207 = vmatprep.subr.bf16.mxu0 0
        %1208 = vmatpush1.bf16.msra.mxu0 0
        %1209 = vmatprep.subr.bf16.mxu0 0
        %1210 = vmatpush1.bf16.msra.mxu0 0
        %1211 = vmatprep.subr.bf16.mxu0 0
        %1212 = vmatpush1.bf16.msra.mxu0 0
        %1213 = vmatprep.subr.bf16.mxu0 0
        %1214 = vmatpush1.bf16.msra.mxu0 0
        %1215 = vmatprep.subr.bf16.mxu0 0
        %1216 = vmatpush1.bf16.msra.mxu0 0
        %1217 = vmatprep.subr.bf16.mxu0 0
        %1218 = vmatpush1.bf16.msra.mxu0 0
        %1219 = vmatprep.subr.bf16.mxu0 0
        %1220 = vmatpush1.bf16.msra.mxu0 0
        %1221 = vmatprep.subr.bf16.mxu0 0
        %1222 = vmatpush1.bf16.msra.mxu0 0
        %1223 = vmatprep.subr.bf16.mxu0 0
        %1224 = vmatpush1.bf16.msra.mxu0 0
        %1225 = vmatprep.subr.bf16.mxu0 0
        %1226 = vmatpush1.bf16.msra.mxu0 0
        %1227 = vmatprep.mubr.bf16.mxu0 0
        %1228 = vmatmul.mubr.bf16.gmra.mrb[0].mxu0 %v693
        %v1229 = vpop.f32.mrb[0].mxu0
        %v1230 = vadd.f32 0.0, %v1229
        %v1231 = vpop.f32.mrb[0].mxu0
        %v1232 = vpop.f32.mrb[0].mxu0
        %v1233 = vpop.f32.mrb[0].mxu0
        %1234 = vdwg.mxu0
        %v1235 = vmul.f32 %v1055, %v1065
        %v1237 = vsel %vm1119, %v1235, 0
        %1239 = vmatprep.subr.mxu0 0.0
        %1240 = vmatpush1.msra.mxu0 %v455
        %1241 = vmatprep.subr.mxu0 0.0
        %1242 = vmatpush1.msra.mxu0 0.0
        %1243 = vmatprep.subr.mxu0 0.0
        %1244 = vmatpush1.msra.mxu0 0.0
        %1245 = vmatprep.subr.mxu0 0.0
        %1246 = vmatpush1.msra.mxu0 0.0
        %1247 = vmatprep.subr.mxu0 0.0
        %1248 = vmatpush1.msra.mxu0 0.0
        %1249 = vmatprep.subr.mxu0 0.0
        %1250 = vmatpush1.msra.mxu0 0.0
        %1251 = vmatprep.subr.mxu0 0.0
        %1252 = vmatpush1.msra.mxu0 0.0
        %1253 = vmatprep.subr.mxu0 0.0
        %1254 = vmatpush1.msra.mxu0 0.0
        %1255 = vmatprep.subr.mxu0 0.0
        %1256 = vmatpush1.msra.mxu0 0.0
        %1257 = vmatprep.subr.mxu0 0.0
        %1258 = vmatpush1.msra.mxu0 0.0
        %1259 = vmatprep.subr.mxu0 0.0
        %1260 = vmatpush1.msra.mxu0 0.0
        %1261 = vmatprep.subr.mxu0 0.0
        %1262 = vmatpush1.msra.mxu0 0.0
        %1263 = vmatprep.subr.mxu0 0.0
        %1264 = vmatpush1.msra.mxu0 0.0
        %1265 = vmatprep.subr.mxu0 0.0
        %1266 = vmatpush1.msra.mxu0 0.0
        %1267 = vmatprep.subr.mxu0 0.0
        %1268 = vmatpush1.msra.mxu0 0.0
        %1269 = vmatprep.subr.mxu0 0.0
        %1270 = vmatpush1.msra.mxu0 0.0
        %1271 = vmatprep.subr.mxu0 0.0
        %1272 = vmatpush1.msra.mxu0 0.0
        %1273 = vmatprep.subr.mxu0 0.0
        %1274 = vmatpush1.msra.mxu0 0.0
        %1275 = vmatprep.subr.mxu0 0.0
        %1276 = vmatpush1.msra.mxu0 0.0
        %1277 = vmatprep.subr.mxu0 0.0
        %1278 = vmatpush1.msra.mxu0 0.0
        %1279 = vmatprep.subr.mxu0 0.0
        %1280 = vmatpush1.msra.mxu0 0.0
        %1281 = vmatprep.subr.mxu0 0.0
        %1282 = vmatpush1.msra.mxu0 0.0
        %1283 = vmatprep.subr.mxu0 0.0
        %1284 = vmatpush1.msra.mxu0 0.0
        %1285 = vmatprep.subr.mxu0 0.0
        %1286 = vmatpush1.msra.mxu0 0.0
        %1287 = vmatprep.subr.mxu0 0.0
        %1288 = vmatpush1.msra.mxu0 0.0
        %1289 = vmatprep.subr.mxu0 0.0
        %1290 = vmatpush1.msra.mxu0 0.0
        %1291 = vmatprep.subr.mxu0 0.0
        %1292 = vmatpush1.msra.mxu0 0.0
        %1293 = vmatprep.subr.mxu0 0.0
        %1294 = vmatpush1.msra.mxu0 0.0
        %1295 = vmatprep.subr.mxu0 0.0
        %1296 = vmatpush1.msra.mxu0 0.0
        %1297 = vmatprep.subr.mxu0 0.0
        %1298 = vmatpush1.msra.mxu0 0.0
        %1299 = vmatprep.subr.mxu0 0.0
        %1300 = vmatpush1.msra.mxu0 0.0
        %1301 = vmatprep.subr.mxu0 0.0
        %1302 = vmatpush1.msra.mxu0 0.0
        %1303 = vmatprep.mubr.f32.mxu0 0.0
        %1304 = vmatmul.mubr.f32.gmra.mrb[0].mxu0 %v1237
        %v1305 = vpop.f32.mrb[0].mxu0
        %v1306 = vadd.f32 0.0, %v1305
        %v1307 = vpop.f32.mrb[0].mxu0
        %1308 = vdwg.mxu0
        %v1309 = vmul.f32 %v1230, %v1306
        %v1310 = vadd.f32 %v1194, %v1309
        %1311 = vmatprep.subr.bf16.mxu0 0
        %1312 = vmatpush1.bf16.msra.mxu0 %v1074
        %1313 = vmatprep.subr.bf16.mxu0 0
        %1314 = vmatpush1.bf16.msra.mxu0 %v1075
        %1315 = vmatprep.subr.bf16.mxu0 0
        %1316 = vmatpush1.bf16.msra.mxu0 0
        %1317 = vmatprep.subr.bf16.mxu0 0
        %1318 = vmatpush1.bf16.msra.mxu0 0
        %1319 = vmatprep.subr.bf16.mxu0 0
        %1320 = vmatpush1.bf16.msra.mxu0 0
        %1321 = vmatprep.subr.bf16.mxu0 0
        %1322 = vmatpush1.bf16.msra.mxu0 0
        %1323 = vmatprep.subr.bf16.mxu0 0
        %1324 = vmatpush1.bf16.msra.mxu0 0
        %1325 = vmatprep.subr.bf16.mxu0 0
        %1326 = vmatpush1.bf16.msra.mxu0 0
        %1327 = vmatprep.subr.bf16.mxu0 0
        %1328 = vmatpush1.bf16.msra.mxu0 0
        %1329 = vmatprep.subr.bf16.mxu0 0
        %1330 = vmatpush1.bf16.msra.mxu0 0
        %1331 = vmatprep.subr.bf16.mxu0 0
        %1332 = vmatpush1.bf16.msra.mxu0 0
        %1333 = vmatprep.subr.bf16.mxu0 0
        %1334 = vmatpush1.bf16.msra.mxu0 0
        %1335 = vmatprep.subr.bf16.mxu0 0
        %1336 = vmatpush1.bf16.msra.mxu0 0
        %1337 = vmatprep.subr.bf16.mxu0 0
        %1338 = vmatpush1.bf16.msra.mxu0 0
        %1339 = vmatprep.subr.bf16.mxu0 0
        %1340 = vmatpush1.bf16.msra.mxu0 0
        %1341 = vmatprep.subr.bf16.mxu0 0
        %1342 = vmatpush1.bf16.msra.mxu0 0
        %1343 = vmatprep.mubr.bf16.mxu0 0
        %1344 = vmatmul.mubr.bf16.gmra.mrb[0].mxu0 %v812
        %v1345 = vpop.f32.mrb[0].mxu0
        %v1346 = vadd.f32 0.0, %v1345
        %v1347 = vpop.f32.mrb[0].mxu0
        %v1348 = vpop.f32.mrb[0].mxu0
        %v1349 = vpop.f32.mrb[0].mxu0
        %1350 = vdwg.mxu0
        %v1351 = vmul.f32 %v1058, %v1065
        %v1353 = vsel %vm1119, %v1351, 0
        %1355 = vmatprep.subr.mxu0 0.0
        %1356 = vmatpush1.msra.mxu0 %v455
        %1357 = vmatprep.subr.mxu0 0.0
        %1358 = vmatpush1.msra.mxu0 0.0
        %1359 = vmatprep.subr.mxu0 0.0
        %1360 = vmatpush1.msra.mxu0 0.0
        %1361 = vmatprep.subr.mxu0 0.0
        %1362 = vmatpush1.msra.mxu0 0.0
        %1363 = vmatprep.subr.mxu0 0.0
        %1364 = vmatpush1.msra.mxu0 0.0
        %1365 = vmatprep.subr.mxu0 0.0
        %1366 = vmatpush1.msra.mxu0 0.0
        %1367 = vmatprep.subr.mxu0 0.0
        %1368 = vmatpush1.msra.mxu0 0.0
        %1369 = vmatprep.subr.mxu0 0.0
        %1370 = vmatpush1.msra.mxu0 0.0
        %1371 = vmatprep.subr.mxu0 0.0
        %1372 = vmatpush1.msra.mxu0 0.0
        %1373 = vmatprep.subr.mxu0 0.0
        %1374 = vmatpush1.msra.mxu0 0.0
        %1375 = vmatprep.subr.mxu0 0.0
        %1376 = vmatpush1.msra.mxu0 0.0
        %1377 = vmatprep.subr.mxu0 0.0
        %1378 = vmatpush1.msra.mxu0 0.0
        %1379 = vmatprep.subr.mxu0 0.0
        %1380 = vmatpush1.msra.mxu0 0.0
        %1381 = vmatprep.subr.mxu0 0.0
        %1382 = vmatpush1.msra.mxu0 0.0
        %1383 = vmatprep.subr.mxu0 0.0
        %1384 = vmatpush1.msra.mxu0 0.0
        %1385 = vmatprep.subr.mxu0 0.0
        %1386 = vmatpush1.msra.mxu0 0.0
        %1387 = vmatprep.subr.mxu0 0.0
        %1388 = vmatpush1.msra.mxu0 0.0
        %1389 = vmatprep.subr.mxu0 0.0
        %1390 = vmatpush1.msra.mxu0 0.0
        %1391 = vmatprep.subr.mxu0 0.0
        %1392 = vmatpush1.msra.mxu0 0.0
        %1393 = vmatprep.subr.mxu0 0.0
        %1394 = vmatpush1.msra.mxu0 0.0
        %1395 = vmatprep.subr.mxu0 0.0
        %1396 = vmatpush1.msra.mxu0 0.0
        %1397 = vmatprep.subr.mxu0 0.0
        %1398 = vmatpush1.msra.mxu0 0.0
        %1399 = vmatprep.subr.mxu0 0.0
        %1400 = vmatpush1.msra.mxu0 0.0
        %1401 = vmatprep.subr.mxu0 0.0
        %1402 = vmatpush1.msra.mxu0 0.0
        %1403 = vmatprep.subr.mxu0 0.0
        %1404 = vmatpush1.msra.mxu0 0.0
        %1405 = vmatprep.subr.mxu0 0.0
        %1406 = vmatpush1.msra.mxu0 0.0
        %1407 = vmatprep.subr.mxu0 0.0
        %1408 = vmatpush1.msra.mxu0 0.0
        %1409 = vmatprep.subr.mxu0 0.0
        %1410 = vmatpush1.msra.mxu0 0.0
        %1411 = vmatprep.subr.mxu0 0.0
        %1412 = vmatpush1.msra.mxu0 0.0
        %1413 = vmatprep.subr.mxu0 0.0
        %1414 = vmatpush1.msra.mxu0 0.0
        %1415 = vmatprep.subr.mxu0 0.0
        %1416 = vmatpush1.msra.mxu0 0.0
        %1417 = vmatprep.subr.mxu0 0.0
        %1418 = vmatpush1.msra.mxu0 0.0
        %1419 = vmatprep.mubr.f32.mxu0 0.0
        %1420 = vmatmul.mubr.f32.gmra.mrb[0].mxu0 %v1353
        %v1421 = vpop.f32.mrb[0].mxu0
        %v1422 = vadd.f32 0.0, %v1421
        %v1423 = vpop.f32.mrb[0].mxu0
        %1424 = vdwg.mxu0
        %v1425 = vmul.f32 %v1346, %v1422
        %v1426 = vadd.f32 %v1310, %v1425
        %1427 = vmatprep.subr.bf16.mxu0 0
        %1428 = vmatpush1.bf16.msra.mxu0 %v1074
        %1429 = vmatprep.subr.bf16.mxu0 0
        %1430 = vmatpush1.bf16.msra.mxu0 %v1075
        %1431 = vmatprep.subr.bf16.mxu0 0
        %1432 = vmatpush1.bf16.msra.mxu0 0
        %1433 = vmatprep.subr.bf16.mxu0 0
        %1434 = vmatpush1.bf16.msra.mxu0 0
        %1435 = vmatprep.subr.bf16.mxu0 0
        %1436 = vmatpush1.bf16.msra.mxu0 0
        %1437 = vmatprep.subr.bf16.mxu0 0
        %1438 = vmatpush1.bf16.msra.mxu0 0
        %1439 = vmatprep.subr.bf16.mxu0 0
        %1440 = vmatpush1.bf16.msra.mxu0 0
        %1441 = vmatprep.subr.bf16.mxu0 0
        %1442 = vmatpush1.bf16.msra.mxu0 0
        %1443 = vmatprep.subr.bf16.mxu0 0
        %1444 = vmatpush1.bf16.msra.mxu0 0
        %1445 = vmatprep.subr.bf16.mxu0 0
        %1446 = vmatpush1.bf16.msra.mxu0 0
        %1447 = vmatprep.subr.bf16.mxu0 0
        %1448 = vmatpush1.bf16.msra.mxu0 0
        %1449 = vmatprep.subr.bf16.mxu0 0
        %1450 = vmatpush1.bf16.msra.mxu0 0
        %1451 = vmatprep.subr.bf16.mxu0 0
        %1452 = vmatpush1.bf16.msra.mxu0 0
        %1453 = vmatprep.subr.bf16.mxu0 0
        %1454 = vmatpush1.bf16.msra.mxu0 0
        %1455 = vmatprep.subr.bf16.mxu0 0
        %1456 = vmatpush1.bf16.msra.mxu0 0
        %1457 = vmatprep.subr.bf16.mxu0 0
        %1458 = vmatpush1.bf16.msra.mxu0 0
        %1459 = vmatprep.mubr.bf16.mxu0 0
        %1460 = vmatmul.mubr.bf16.gmra.mrb[0].mxu0 %v931
        %v1461 = vpop.f32.mrb[0].mxu0
        %v1462 = vadd.f32 0.0, %v1461
        %v1463 = vpop.f32.mrb[0].mxu0
        %v1464 = vpop.f32.mrb[0].mxu0
        %v1465 = vpop.f32.mrb[0].mxu0
        %1466 = vdwg.mxu0
        %v1467 = vmul.f32 %v1061, %v1065
        %v1469 = vsel %vm1119, %v1467, 0
        %1471 = vmatprep.subr.mxu0 0.0
        %1472 = vmatpush1.msra.mxu0 %v455
        %1473 = vmatprep.subr.mxu0 0.0
        %1474 = vmatpush1.msra.mxu0 0.0
        %1475 = vmatprep.subr.mxu0 0.0
        %1476 = vmatpush1.msra.mxu0 0.0
        %1477 = vmatprep.subr.mxu0 0.0
        %1478 = vmatpush1.msra.mxu0 0.0
        %1479 = vmatprep.subr.mxu0 0.0
        %1480 = vmatpush1.msra.mxu0 0.0
        %1481 = vmatprep.subr.mxu0 0.0
        %1482 = vmatpush1.msra.mxu0 0.0
        %1483 = vmatprep.subr.mxu0 0.0
        %1484 = vmatpush1.msra.mxu0 0.0
        %1485 = vmatprep.subr.mxu0 0.0
        %1486 = vmatpush1.msra.mxu0 0.0
        %1487 = vmatprep.subr.mxu0 0.0
        %1488 = vmatpush1.msra.mxu0 0.0
        %1489 = vmatprep.subr.mxu0 0.0
        %1490 = vmatpush1.msra.mxu0 0.0
        %1491 = vmatprep.subr.mxu0 0.0
        %1492 = vmatpush1.msra.mxu0 0.0
        %1493 = vmatprep.subr.mxu0 0.0
        %1494 = vmatpush1.msra.mxu0 0.0
        %1495 = vmatprep.subr.mxu0 0.0
        %1496 = vmatpush1.msra.mxu0 0.0
        %1497 = vmatprep.subr.mxu0 0.0
        %1498 = vmatpush1.msra.mxu0 0.0
        %1499 = vmatprep.subr.mxu0 0.0
        %1500 = vmatpush1.msra.mxu0 0.0
        %1501 = vmatprep.subr.mxu0 0.0
        %1502 = vmatpush1.msra.mxu0 0.0
        %1503 = vmatprep.subr.mxu0 0.0
        %1504 = vmatpush1.msra.mxu0 0.0
        %1505 = vmatprep.subr.mxu0 0.0
        %1506 = vmatpush1.msra.mxu0 0.0
        %1507 = vmatprep.subr.mxu0 0.0
        %1508 = vmatpush1.msra.mxu0 0.0
        %1509 = vmatprep.subr.mxu0 0.0
        %1510 = vmatpush1.msra.mxu0 0.0
        %1511 = vmatprep.subr.mxu0 0.0
        %1512 = vmatpush1.msra.mxu0 0.0
        %1513 = vmatprep.subr.mxu0 0.0
        %1514 = vmatpush1.msra.mxu0 0.0
        %1515 = vmatprep.subr.mxu0 0.0
        %1516 = vmatpush1.msra.mxu0 0.0
        %1517 = vmatprep.subr.mxu0 0.0
        %1518 = vmatpush1.msra.mxu0 0.0
        %1519 = vmatprep.subr.mxu0 0.0
        %1520 = vmatpush1.msra.mxu0 0.0
        %1521 = vmatprep.subr.mxu0 0.0
        %1522 = vmatpush1.msra.mxu0 0.0
        %1523 = vmatprep.subr.mxu0 0.0
        %1524 = vmatpush1.msra.mxu0 0.0
        %1525 = vmatprep.subr.mxu0 0.0
        %1526 = vmatpush1.msra.mxu0 0.0
        %1527 = vmatprep.subr.mxu0 0.0
        %1528 = vmatpush1.msra.mxu0 0.0
        %1529 = vmatprep.subr.mxu0 0.0
        %1530 = vmatpush1.msra.mxu0 0.0
        %1531 = vmatprep.subr.mxu0 0.0
        %1532 = vmatpush1.msra.mxu0 0.0
        %1533 = vmatprep.subr.mxu0 0.0
        %1534 = vmatpush1.msra.mxu0 0.0
        %1535 = vmatprep.mubr.f32.mxu0 0.0
        %1536 = vmatmul.mubr.f32.gmra.mrb[0].mxu0 %v1469
        %v1537 = vpop.f32.mrb[0].mxu0
        %v1538 = vadd.f32 0.0, %v1537
        %v1539 = vpop.f32.mrb[0].mxu0
        %1540 = vdwg.mxu0
        %v1541 = vmul.f32 %v1462, %v1538
        %v1542 = vadd.f32 %v1426, %v1541
        %v1543 = vpack.c.bf16 %v1542, %v1542
        %v1548 = vunpack.c.l.b16 %v447
        %v1549 = vunpack.c.l.b16 %v448
        %v1550 = vunpack.c.l.b16 %v449
        %v1551 = vunpack.c.l.b16 %v450
        %v1552 = vpack.c.b16 %v1549, %v1548
        %v1553 = vpack.c.b16 %v1551, %v1550
        %v1557 = vsel %vm469, %v1543, 0
        %1559 = vmatprep.subr.bf16.mxu0 0
        %1560 = vmatpush1.bf16.msra.mxu0 %v1552
        %1561 = vmatprep.subr.bf16.mxu0 0
        %1562 = vmatpush1.bf16.msra.mxu0 %v1553
        %1563 = vmatprep.subr.bf16.mxu0 0
        %1564 = vmatpush1.bf16.msra.mxu0 0
        %1565 = vmatprep.subr.bf16.mxu0 0
        %1566 = vmatpush1.bf16.msra.mxu0 0
        %1567 = vmatprep.subr.bf16.mxu0 0
        %1568 = vmatpush1.bf16.msra.mxu0 0
        %1569 = vmatprep.subr.bf16.mxu0 0
        %1570 = vmatpush1.bf16.msra.mxu0 0
        %1571 = vmatprep.subr.bf16.mxu0 0
        %1572 = vmatpush1.bf16.msra.mxu0 0
        %1573 = vmatprep.subr.bf16.mxu0 0
        %1574 = vmatpush1.bf16.msra.mxu0 0
        %1575 = vmatprep.subr.bf16.mxu0 0
        %1576 = vmatpush1.bf16.msra.mxu0 0
        %1577 = vmatprep.subr.bf16.mxu0 0
        %1578 = vmatpush1.bf16.msra.mxu0 0
        %1579 = vmatprep.subr.bf16.mxu0 0
        %1580 = vmatpush1.bf16.msra.mxu0 0
        %1581 = vmatprep.subr.bf16.mxu0 0
        %1582 = vmatpush1.bf16.msra.mxu0 0
        %1583 = vmatprep.subr.bf16.mxu0 0
        %1584 = vmatpush1.bf16.msra.mxu0 0
        %1585 = vmatprep.subr.bf16.mxu0 0
        %1586 = vmatpush1.bf16.msra.mxu0 0
        %1587 = vmatprep.subr.bf16.mxu0 0
        %1588 = vmatpush1.bf16.msra.mxu0 0
        %1589 = vmatprep.subr.bf16.mxu0 0
        %1590 = vmatpush1.bf16.msra.mxu0 0
        %1591 = vmatprep.mubr.bf16.mxu0 0
        %1592 = vmatmul.mubr.bf16.gmra.mrb[0].mxu0 %v1557
        %v1593 = vpop.f32.mrb[0].mxu0
        %v1594 = vadd.f32 0.0, %v1593
        %v1595 = vpop.f32.mrb[0].mxu0
        %v1596 = vpop.f32.mrb[0].mxu0
        %v1597 = vpop.f32.mrb[0].mxu0
        %1598 = vdwg.mxu0
        %1599 = vst.msk [vmem:[%s433] sm:$0xff] %vm469, %v1594
        %s1600 = sand.u32 %s242, 1
        %s1601 = scalar_lea.sflag [#allocation4], %s1600
        %s1602 = sand.u32 %s242, 1
        %s1603 = smul.addr %s1602, 8
        %s1604 = scalar_lea.vmem [#allocation10], %s1603
        // Predicated region
        $region73: #{tpu_custom_call.1} parent=55 // pred_check
          %p1605 = pneg %p252
        $region74: #{tpu_custom_call.1} parent=55 // pred_check_branch
          %1607 = sbr.rel (%p1605) target = $region76
        $region75: #{tpu_custom_call.1} parent=55 // pred_region
          %s1609 = ssub.s32 128, 128
          %1610 = vsyncadd %s1601, %s1609
          %s1611 = smul.addr %s30, 128
          %s1612 = scalar_lea.hbm %s9, %s1611
          %s1614 = sshll.u32 %s1604, 4
          %s1615 = int_to_ptr.vmem [resolvable:$true] %s1614
          %1617 = dma.vmem_to_hbm [thread:$0]  %s1615, 128, %s1612, %s1601
        $region76: #{tpu_custom_call.1} parent=55 // pred_fallthru
          _
      $region56: #{tpu_custom_call.1} parent=5 // pred_fallthru
        _
      %p1618 = scmp.le.s32.totalorder 2, %s25
      // Predicated region
      $region77: #{tpu_custom_call.1} parent=5 // pred_check
        %p1619 = pneg %p1618
      $region78: #{tpu_custom_call.1} parent=5 // pred_check_branch
        %1621 = sbr.rel (%p1619) target = $region80
      $region79: #{tpu_custom_call.1} parent=5 // pred_region
        %s1622 = ssub.s32 %s25, 2
        // Predicated region
        $region81: #{tpu_custom_call.1} parent=79 // pred_check
          %p1623 = pneg %p258
        $region82: #{tpu_custom_call.1} parent=79 // pred_check_branch
          %1625 = sbr.rel (%p1623) target = $region84
        $region83: #{tpu_custom_call.1} parent=79 // pred_region
          %s1626 = sand.u32 %s243, 1
          %s1627 = scalar_lea.sflag [#allocation4], %s1626
          %s1628 = sand.u32 %s243, 1
          %s1629 = smul.addr %s1628, 8
          %s1630 = scalar_lea.vmem [#allocation10], %s1629
          %1631 = dma.done %s1627, 128
        $region84: #{tpu_custom_call.1} parent=79 // pred_fallthru
          _
      $region80: #{tpu_custom_call.1} parent=5 // pred_fallthru
        _
    $region6: #{tpu_custom_call.1} parent=1 // loop_footer
      %s29 = sadd.s32 1, %s25
    $region7: #{tpu_custom_call.1} parent=1 // loop_footer_branch
      %24 = sbr.rel target = $region3
    $region8: #{tpu_custom_call.1} parent=1 // loop_exit
      _
    %1632 = vsyncpa [#allocation3], 1
    %s1633 = scalar_lea.sflag [#allocation3], 1
    %1634 = vsyncpa %s1633, 1
    %1635 = vsyncpa [#allocation6], 1
    %s1636 = scalar_lea.sflag [#allocation6], 1
    %1637 = vsyncpa %s1636, 1
    %1638 = vsyncpa [#allocation9], 1
    %1639 = vsyncpa [#allocation4], 1
    %s1640 = scalar_lea.sflag [#allocation4], 1
    %1641 = vsyncpa %s1640, 1

</llo_original>
